<compile_context>
chip_gen: v5e
topology: v5e:2x2
jax: 0.10.0
libtpu: 0.0.40
codegen_flags: <defaults>
</compile_context>

<pallas_src>
import jax
import jax.numpy as jnp
from jax import lax
from jax.experimental import pallas as pl
from jax.experimental.pallas import tpu as pltpu

# ---- module hyperparameters (from the PyTorch source) ----
BLOCK_SIZE = 8                    # T (sequence length)
EMBED = 64                        # embedding_count (C)
NUM_HEADS = 4                     # head_count
HEAD_SIZE = EMBED // NUM_HEADS    # 16
SCALE = NUM_HEADS ** (-0.5)       # matches the PyTorch code (NOT head_size**-0.5)
NEG_INF = -1e30                   # finite mask sentinel (robust vs. -inf)


def mha_kernel(x_ref, wqkv_ref, wproj_ref, bproj_ref, o_ref):
    # x_ref: (rows, C) bf16 with rows = TB * T (TB whole batch elements).
    rows = x_ref.shape[0]
    tb = rows // BLOCK_SIZE

    x = x_ref[...]                                               # bf16 (rows, C)

    # Fused Q|K|V projection: one (rows, C) x (C, 3C) MXU matmul, f32 accumulate.
    qkv = jnp.dot(x, wqkv_ref[...], preferred_element_type=jnp.float32)
    qkv = qkv.astype(jnp.bfloat16)                               # (rows, 3C)

    def gather_heads(base):
        # (rows, C) lane-block -> (NUM_HEADS*tb, T, HEAD_SIZE): heads folded
        # into the leading batch axis (only static lane slices + a leading-dim
        # concat; no transposes).
        parts = [
            qkv[:, base + h * HEAD_SIZE: base + (h + 1) * HEAD_SIZE]
            .reshape(tb, BLOCK_SIZE, HEAD_SIZE)
            for h in range(NUM_HEADS)
        ]
        return jnp.concatenate(parts, axis=0)

    q = gather_heads(0)
    k = gather_heads(EMBED)
    v = gather_heads(2 * EMBED)

    # Batched attention scores over (head x batch-tile); contraction on the last
    # dim so no explicit transpose is emitted.  f32 accumulation.
    logits = jnp.einsum("bqd,bkd->bqk", q, k,
                        preferred_element_type=jnp.float32) * SCALE

    row_i = lax.broadcasted_iota(jnp.int32, (BLOCK_SIZE, BLOCK_SIZE), 0)
    col_i = lax.broadcasted_iota(jnp.int32, (BLOCK_SIZE, BLOCK_SIZE), 1)
    causal = (row_i >= col_i)[None, :, :]                        # (1, T, T)
    logits = jnp.where(causal, logits, NEG_INF)

    # Softmax in f32 (EUP exp); attention dropout is identity in eval mode.
    m = jnp.max(logits, axis=-1, keepdims=True)
    p = jnp.exp(logits - m)
    p = p / jnp.sum(p, axis=-1, keepdims=True)

    att = jnp.einsum("bqk,bkd->bqd", p.astype(jnp.bfloat16), v,
                     preferred_element_type=jnp.float32)         # (H*tb, T, hs)

    # Reassemble heads along lanes: (H*tb, T, hs) -> (rows, C), matching
    # torch.cat([head(x) ...], dim=-1).
    heads = [att[h * tb:(h + 1) * tb] for h in range(NUM_HEADS)]
    att2d = jnp.concatenate(heads, axis=-1).reshape(rows, EMBED)
    att2d = att2d.astype(jnp.bfloat16)

    # Output projection (with bias); final dropout is identity in eval mode.
    out = jnp.dot(att2d, wproj_ref[...], preferred_element_type=jnp.float32)
    out = out + bproj_ref[...]
    o_ref[...] = out.astype(o_ref.dtype)


def multi_head_attention(x, params, *, batch_block=16):
    """x: (B, T, C) float32.  params: dict from init_params."""
    B, T, C = x.shape
    assert T == BLOCK_SIZE and C == EMBED

    # TB batch elements per grid step; cap so there are >= 2 grid steps
    # (keeps both v7x TensorCores busy).  TB*T rows per step feeds the MXU.
    tb = max(1, min(batch_block, pl.cdiv(B, 2)))
    n_blocks = pl.cdiv(B, tb)
    b_pad = n_blocks * tb
    if b_pad != B:
        x = jnp.concatenate(
            [x, jnp.zeros((b_pad - B, T, C), x.dtype)], axis=0)

    # Flatten to (rows, C): removes the size-8 leading tile dim so loads/stores
    # coalesce; blocks of TB*T rows never split a batch element.
    x_rows = x.reshape(b_pad * T, C).astype(jnp.bfloat16)
    rows_blk = tb * T

    # Pack weights in the wrapper (free): fused QKV (C, 3C), bf16 operands.
    w_qkv = jnp.concatenate(
        [params["wq"], params["wk"], params["wv"]], axis=1).astype(jnp.bfloat16)
    w_proj = params["w_proj"].astype(jnp.bfloat16)
    b_proj = params["b_proj"].reshape(1, C).astype(jnp.float32)

    out = pl.pallas_call(
        mha_kernel,
        out_shape=jax.ShapeDtypeStruct((b_pad * T, C), jnp.float32),
        grid_spec=pltpu.PrefetchScalarGridSpec(
            num_scalar_prefetch=0,
            grid=(n_blocks,),
            in_specs=[
                pl.BlockSpec((rows_blk, C), lambda i: (i, 0)),     # activations
                # Constant index_maps -> weights stay resident in VMEM.
                pl.BlockSpec((C, 3 * C), lambda i: (0, 0)),        # fused QKV
                pl.BlockSpec((C, C), lambda i: (0, 0)),            # projection
                pl.BlockSpec((1, C), lambda i: (0, 0)),            # proj bias
            ],
            out_specs=pl.BlockSpec((rows_blk, C), lambda i: (i, 0)),
        ),
        compiler_params=pltpu.CompilerParams(
            dimension_semantics=("parallel",)),
    )(x_rows, w_qkv, w_proj, b_proj)

    return out.reshape(b_pad, T, C)[:B]


def init_params(key):
    ks = jax.random.split(key, 5)
    s = 0.02
    return {
        # Column block h*hs:(h+1)*hs of each weight is head h's projection,
        # equivalent to the per-head nn.Linear(embedding, head_size, bias=False).
        "wq": s * jax.random.normal(ks[0], (EMBED, EMBED), jnp.float32),
        "wk": s * jax.random.normal(ks[1], (EMBED, EMBED), jnp.float32),
        "wv": s * jax.random.normal(ks[2], (EMBED, EMBED), jnp.float32),
        "w_proj": s * jax.random.normal(ks[3], (EMBED, EMBED), jnp.float32),
        "b_proj": s * jax.random.normal(ks[4], (EMBED,), jnp.float32),
    }


def reference_mha(x, p):
    """Pure-JAX f32 reference replicating the PyTorch forward (eval mode)."""
    B, T, C = x.shape
    q = x @ p["wq"]
    k = x @ p["wk"]
    v = x @ p["wv"]

    def split(a):
        return a.reshape(B, T, NUM_HEADS, HEAD_SIZE).transpose(0, 2, 1, 3)

    qh, kh, vh = split(q), split(k), split(v)
    logits = jnp.einsum("bhtd,bhsd->bhts", qh, kh) * SCALE
    mask = jnp.tril(jnp.ones((T, T), dtype=bool))
    logits = jnp.where(mask, logits, -jnp.inf)
    w = jax.nn.softmax(logits, axis=-1)
    att = jnp.einsum("bhts,bhsd->bthd", w, vh).reshape(B, T, C)
    return att @ p["w_proj"] + p["b_proj"]


if __name__ == "__main__":
    key = jax.random.PRNGKey(0)
    k_x, k_p = jax.random.split(key)

    B = 16  # batch_size from the module
    x = jax.random.normal(k_x, (B, BLOCK_SIZE, EMBED), jnp.float32)
    params = init_params(k_p)

    out = jax.block_until_ready(multi_head_attention(x, params))
    ref = reference_mha(x, params)

    assert out.shape == (B, BLOCK_SIZE, EMBED)
    max_err = float(jnp.max(jnp.abs(out - ref)))
    # bf16 MXU operands with f32 accumulation vs. a pure-f32 reference.
    assert jnp.allclose(out, ref, atol=2e-2, rtol=2e-2), max_err
    print("KERNEL_OK")
</pallas_src>

<mosaic_0001>
module attributes {stable_mosaic.version = 11 : i64} {
  func.func @mha_kernel(%arg0: i32, %arg1: memref<64x64xbf16, #tpu.memory_space<vmem>>, %arg2: memref<64x192xbf16, #tpu.memory_space<vmem>>, %arg3: memref<64x64xbf16, #tpu.memory_space<vmem>>, %arg4: memref<1x64xf32, #tpu.memory_space<vmem>>, %arg5: memref<64x64xf32, #tpu.memory_space<vmem>>) attributes {dimension_semantics = [#tpu.dimension_semantics<parallel>], iteration_bounds = array<i64: 2>, scalar_prefetch = 0 : i64, scratch_operands = 0 : i64, tpu.core_type = #tpu.core_type<tc>, window_params = [{transform_indices = @transform_0, window_bounds = array<i64: 64, 64>}, {pipeline_mode = #tpu.pipeline_mode<synchronous>, transform_indices = @transform_1, window_bounds = array<i64: 64, 192>}, {pipeline_mode = #tpu.pipeline_mode<synchronous>, transform_indices = @transform_2, window_bounds = array<i64: 64, 64>}, {pipeline_mode = #tpu.pipeline_mode<synchronous>, transform_indices = @transform_3, window_bounds = array<i64: 1, 64>}, {transform_indices = @transform_4, window_bounds = array<i64: 64, 64>}]} {
    %c0 = arith.constant 0 : index
    %c0_0 = arith.constant 0 : index
    %0 = vector.load %arg1[%c0, %c0_0] : memref<64x64xbf16, #tpu.memory_space<vmem>>, vector<64x64xbf16>
    %c0_1 = arith.constant 0 : index
    %c0_2 = arith.constant 0 : index
    %1 = vector.load %arg2[%c0_1, %c0_2] : memref<64x192xbf16, #tpu.memory_space<vmem>>, vector<64x192xbf16>
    %cst = arith.constant dense<0.000000e+00> : vector<64x192xf32>
    %2 = tpu.matmul %0, %1, %cst {dimension_numbers = #tpu.dot_dimension_numbers<[1], [0], [0], [1], [0, 0, 1, 1], [], []>} : vector<64x64xbf16>, vector<64x192xbf16>, vector<64x192xf32> -> vector<64x192xf32>
    %3 = arith.truncf %2 : vector<64x192xf32> to vector<64x192xbf16>
    %4 = vector.extract_strided_slice %3 {offsets = [0, 0], sizes = [64, 16], strides = [1, 1]} : vector<64x192xbf16> to vector<64x16xbf16>
    %5 = vector.shape_cast %4 : vector<64x16xbf16> to vector<8x8x16xbf16>
    %6 = vector.extract_strided_slice %3 {offsets = [0, 16], sizes = [64, 16], strides = [1, 1]} : vector<64x192xbf16> to vector<64x16xbf16>
    %7 = vector.shape_cast %6 : vector<64x16xbf16> to vector<8x8x16xbf16>
    %8 = vector.extract_strided_slice %3 {offsets = [0, 32], sizes = [64, 16], strides = [1, 1]} : vector<64x192xbf16> to vector<64x16xbf16>
    %9 = vector.shape_cast %8 : vector<64x16xbf16> to vector<8x8x16xbf16>
    %10 = vector.extract_strided_slice %3 {offsets = [0, 48], sizes = [64, 16], strides = [1, 1]} : vector<64x192xbf16> to vector<64x16xbf16>
    %11 = vector.shape_cast %10 : vector<64x16xbf16> to vector<8x8x16xbf16>
    %12 = tpu.concatenate %5, %7, %9, %11 in 0 : vector<8x8x16xbf16>, vector<8x8x16xbf16>, vector<8x8x16xbf16>, vector<8x8x16xbf16> -> vector<32x8x16xbf16>
    %13 = vector.extract_strided_slice %3 {offsets = [0, 64], sizes = [64, 16], strides = [1, 1]} : vector<64x192xbf16> to vector<64x16xbf16>
    %14 = vector.shape_cast %13 : vector<64x16xbf16> to vector<8x8x16xbf16>
    %15 = vector.extract_strided_slice %3 {offsets = [0, 80], sizes = [64, 16], strides = [1, 1]} : vector<64x192xbf16> to vector<64x16xbf16>
    %16 = vector.shape_cast %15 : vector<64x16xbf16> to vector<8x8x16xbf16>
    %17 = vector.extract_strided_slice %3 {offsets = [0, 96], sizes = [64, 16], strides = [1, 1]} : vector<64x192xbf16> to vector<64x16xbf16>
    %18 = vector.shape_cast %17 : vector<64x16xbf16> to vector<8x8x16xbf16>
    %19 = vector.extract_strided_slice %3 {offsets = [0, 112], sizes = [64, 16], strides = [1, 1]} : vector<64x192xbf16> to vector<64x16xbf16>
    %20 = vector.shape_cast %19 : vector<64x16xbf16> to vector<8x8x16xbf16>
    %21 = tpu.concatenate %14, %16, %18, %20 in 0 : vector<8x8x16xbf16>, vector<8x8x16xbf16>, vector<8x8x16xbf16>, vector<8x8x16xbf16> -> vector<32x8x16xbf16>
    %22 = vector.extract_strided_slice %3 {offsets = [0, 128], sizes = [64, 16], strides = [1, 1]} : vector<64x192xbf16> to vector<64x16xbf16>
    %23 = vector.shape_cast %22 : vector<64x16xbf16> to vector<8x8x16xbf16>
    %24 = vector.extract_strided_slice %3 {offsets = [0, 144], sizes = [64, 16], strides = [1, 1]} : vector<64x192xbf16> to vector<64x16xbf16>
    %25 = vector.shape_cast %24 : vector<64x16xbf16> to vector<8x8x16xbf16>
    %26 = vector.extract_strided_slice %3 {offsets = [0, 160], sizes = [64, 16], strides = [1, 1]} : vector<64x192xbf16> to vector<64x16xbf16>
    %27 = vector.shape_cast %26 : vector<64x16xbf16> to vector<8x8x16xbf16>
    %28 = vector.extract_strided_slice %3 {offsets = [0, 176], sizes = [64, 16], strides = [1, 1]} : vector<64x192xbf16> to vector<64x16xbf16>
    %29 = vector.shape_cast %28 : vector<64x16xbf16> to vector<8x8x16xbf16>
    %30 = tpu.concatenate %23, %25, %27, %29 in 0 : vector<8x8x16xbf16>, vector<8x8x16xbf16>, vector<8x8x16xbf16>, vector<8x8x16xbf16> -> vector<32x8x16xbf16>
    "tpu.trace_start"() <{level = 10 : i32, message = "bqd,bkd->bqk"}> : () -> ()
    %cst_3 = arith.constant dense<0.000000e+00> : vector<32x8x8xf32>
    %31 = tpu.matmul %12, %21, %cst_3 {dimension_numbers = #tpu.dot_dimension_numbers<[2], [2], [1], [1], [0, 0, 0, 1, 1, 1], [0], [0]>} : vector<32x8x16xbf16>, vector<32x8x16xbf16>, vector<32x8x8xf32> -> vector<32x8x8xf32>
    "tpu.trace_stop"() : () -> ()
    %cst_4 = arith.constant 5.000000e-01 : f32
    %32 = vector.broadcast %cst_4 : f32 to vector<32x8x8xf32>
    %33 = arith.mulf %31, %32 : vector<32x8x8xf32>
    %34 = tpu.iota {dimensions = array<i32: 0>} : vector<8x8xi32>
    %35 = tpu.iota {dimensions = array<i32: 1>} : vector<8x8xi32>
    %36 = arith.cmpi sge, %34, %35 : vector<8x8xi32>
    %37 = vector.shape_cast %36 : vector<8x8xi1> to vector<1x8x8xi1>
    %cst_5 = arith.constant -1.000000e+30 : f32
    %38 = vector.shape_cast %37 : vector<1x8x8xi1> to vector<1x8x8xi1>
    %39 = vector.broadcast %38 : vector<1x8x8xi1> to vector<32x8x8xi1>
    %40 = vector.broadcast %cst_5 : f32 to vector<32x8x8xf32>
    %41 = arith.select %39, %33, %40 : vector<32x8x8xi1>, vector<32x8x8xf32>
    %cst_6 = arith.constant dense<0xFF800000> : vector<32x8xf32>
    %42 = vector.multi_reduction <maximumf>, %41, %cst_6 [2] : vector<32x8x8xf32> to vector<32x8xf32>
    %43 = vector.shape_cast %42 : vector<32x8xf32> to vector<32x8x1xf32>
    %44 = vector.broadcast %43 : vector<32x8x1xf32> to vector<32x8x8xf32>
    %45 = arith.subf %41, %44 : vector<32x8x8xf32>
    %46 = math.exp %45 : vector<32x8x8xf32>
    %cst_7 = arith.constant dense<0.000000e+00> : vector<32x8xf32>
    %47 = vector.multi_reduction <add>, %46, %cst_7 [2] : vector<32x8x8xf32> to vector<32x8xf32>
    %48 = vector.shape_cast %47 : vector<32x8xf32> to vector<32x8x1xf32>
    %49 = vector.broadcast %48 : vector<32x8x1xf32> to vector<32x8x8xf32>
    %50 = arith.divf %46, %49 : vector<32x8x8xf32>
    %51 = arith.truncf %50 : vector<32x8x8xf32> to vector<32x8x8xbf16>
    "tpu.trace_start"() <{level = 10 : i32, message = "bqk,bkd->bqd"}> : () -> ()
    %cst_8 = arith.constant dense<0.000000e+00> : vector<32x8x16xf32>
    %52 = tpu.matmul %51, %30, %cst_8 {dimension_numbers = #tpu.dot_dimension_numbers<[2], [1], [1], [2], [0, 0, 0, 1, 1, 2], [0], [0]>} : vector<32x8x8xbf16>, vector<32x8x16xbf16>, vector<32x8x16xf32> -> vector<32x8x16xf32>
    "tpu.trace_stop"() : () -> ()
    %53 = vector.extract_strided_slice %52 {offsets = [0, 0, 0], sizes = [8, 8, 16], strides = [1, 1, 1]} : vector<32x8x16xf32> to vector<8x8x16xf32>
    %54 = vector.extract_strided_slice %52 {offsets = [8, 0, 0], sizes = [8, 8, 16], strides = [1, 1, 1]} : vector<32x8x16xf32> to vector<8x8x16xf32>
    %55 = vector.extract_strided_slice %52 {offsets = [16, 0, 0], sizes = [8, 8, 16], strides = [1, 1, 1]} : vector<32x8x16xf32> to vector<8x8x16xf32>
    %56 = vector.extract_strided_slice %52 {offsets = [24, 0, 0], sizes = [8, 8, 16], strides = [1, 1, 1]} : vector<32x8x16xf32> to vector<8x8x16xf32>
    %57 = tpu.concatenate %53, %54, %55, %56 in 2 : vector<8x8x16xf32>, vector<8x8x16xf32>, vector<8x8x16xf32>, vector<8x8x16xf32> -> vector<8x8x64xf32>
    %58 = vector.shape_cast %57 : vector<8x8x64xf32> to vector<64x64xf32>
    %59 = arith.truncf %58 : vector<64x64xf32> to vector<64x64xbf16>
    %c0_9 = arith.constant 0 : index
    %c0_10 = arith.constant 0 : index
    %60 = vector.load %arg3[%c0_9, %c0_10] : memref<64x64xbf16, #tpu.memory_space<vmem>>, vector<64x64xbf16>
    %cst_11 = arith.constant dense<0.000000e+00> : vector<64x64xf32>
    %61 = tpu.matmul %59, %60, %cst_11 {dimension_numbers = #tpu.dot_dimension_numbers<[1], [0], [0], [1], [0, 0, 1, 1], [], []>} : vector<64x64xbf16>, vector<64x64xbf16>, vector<64x64xf32> -> vector<64x64xf32>
    %c0_12 = arith.constant 0 : index
    %c0_13 = arith.constant 0 : index
    %62 = vector.load %arg4[%c0_12, %c0_13] : memref<1x64xf32, #tpu.memory_space<vmem>>, vector<1x64xf32>
    %63 = vector.broadcast %62 : vector<1x64xf32> to vector<64x64xf32>
    %64 = arith.addf %61, %63 : vector<64x64xf32>
    %c0_14 = arith.constant 0 : index
    %c0_15 = arith.constant 0 : index
    %65 = vector.load %arg5[%c0_14, %c0_15] : memref<64x64xf32, #tpu.memory_space<vmem>>, vector<64x64xf32>
    tpu.vector_store %arg5[%c0_14, %c0_15], %64 {strides = array<i32>} : memref<64x64xf32, #tpu.memory_space<vmem>>, vector<64x64xf32>,
    return
  }
  func.func @transform_0(%arg0: i32) -> (i32, i32) {
    %c0_i32 = arith.constant 0 : i32
    %c0_i32_0 = arith.constant 0 : i32
    return %arg0, %c0_i32 : i32, i32
  }
  func.func @transform_1(%arg0: i32) -> (i32, i32) {
    %c0_i32 = arith.constant 0 : i32
    %c0_i32_0 = arith.constant 0 : i32
    %c0_i32_1 = arith.constant 0 : i32
    return %c0_i32, %c0_i32_0 : i32, i32
  }
  func.func @transform_2(%arg0: i32) -> (i32, i32) {
    %c0_i32 = arith.constant 0 : i32
    %c0_i32_0 = arith.constant 0 : i32
    %c0_i32_1 = arith.constant 0 : i32
    return %c0_i32, %c0_i32_0 : i32, i32
  }
  func.func @transform_3(%arg0: i32) -> (i32, i32) {
    %c0_i32 = arith.constant 0 : i32
    %c0_i32_0 = arith.constant 0 : i32
    %c0_i32_1 = arith.constant 0 : i32
    return %c0_i32, %c0_i32_0 : i32, i32
  }
  func.func @transform_4(%arg0: i32) -> (i32, i32) {
    %c0_i32 = arith.constant 0 : i32
    %c0_i32_0 = arith.constant 0 : i32
    return %arg0, %c0_i32 : i32, i32
  }
}

</mosaic_0001>

<llo_original>
// kernel: tpu_custom_call.1
$region0: #{tpu_custom_call.1}
  #allocation0 [shape = 'u32[]', space=smem, size = 0x4, offset = 0x4, fixed_abs, tag = 'smem constant byte address 0x4 - core index']
  #allocation1 [shape = 'u32[72,128]{1,0:T(1,128)}', space=vmem, size = 0x9000, scoped, tag = 'internal scratch']
  %s0 = inlined_call_operand.vmem [shape: bf16[128,64], index: 0, kind: input, shape index: {}]
  %s1 = inlined_call_operand.vmem [shape: bf16[64,192], index: 1, kind: input, shape index: {}]
  %s2 = inlined_call_operand.vmem [shape: bf16[64,64], index: 2, kind: input, shape index: {}]
  %s3 = inlined_call_operand.vmem [shape: f32[1,64], index: 3, kind: input, shape index: {}]
  %s4 = inlined_call_operand.vmem [shape: f32[128,64], index: 4, kind: output, shape index: {}]
  %s5 = sld [smem:[#allocation0]]
  $region49: #{tpu_custom_call.1} parent=0
    _
  %s7 = ssub.s32 1, %s5
  %s8 = scalar_select 0, %s7, %s5
  loop: start=0, step=1, limit=4
  $region2: #{tpu_custom_call.1} parent=0 // loop_pre_header
    _
  $region3: #{tpu_custom_call.1} parent=0 // loop_header
    %s10 = sphi 0, %s14
    %p11 = scmp.ge.s32.totalorder %s10, 4
    %s20 = sphi 0, %s22
    %s23 = sphi 0, %s20
    %s24 = sphi 0, %s23
    %s40 = sphi 0, %s24
    %s44 = sphi 0, %s44
    %s46 = sphi 0, %s44
    %s47 = sphi 0, %s46
    %s61 = sphi 0, %s47
    %s65 = sphi 0, %s65
    %s67 = sphi 0, %s65
    %s68 = sphi 0, %s67
    %s82 = sphi 0, %s68
    %s86 = sphi 0, %s86
    %s88 = sphi 0, %s86
    %s89 = sphi 0, %s88
    %s103 = sphi 0, %s89
    %s109 = sphi 0, %s111
    %s112 = sphi 0, %s109
    %s113 = sphi 0, %s112
    %s129 = sphi 0, %s113
  $region4: #{tpu_custom_call.1} parent=0 // loop_header_branch
    %13 = sbr.rel (%p11) target = $region8
  $region5: #{tpu_custom_call.1} parent=0 // loop_body
    %s15 = ssub.s32 %s10, 1
    %s16 = ssub.s32 %s10, 2
    %s17 = sadd.s32 %s10, 1
    %s18 = ssub.s32 %s10, %s17
    %p19 = scmp.eq.s32.totalorder %s18, 0
    %s21 = sadd.s32 %s20, 1
    %s22 = scalar_select %p19, %s20, %s21
    %p25 = pneg %p19
    %p26 = scmp.eq.s32.totalorder %s10, 1
    %p27 = por %p25, %p26
    %p28 = scmp.ne.s32.totalorder %s20, %s23
    %p29 = scmp.eq.s32.totalorder %s10, 0
    %p30 = por %p28, %p29
    %p31 = scmp.ne.s32.totalorder %s20, %s23
    %p32 = scmp.eq.s32.totalorder %s15, 1
    %p33 = por %p31, %p32
    %p34 = scmp.ne.s32.totalorder %s23, %s24
    %p35 = scmp.eq.s32.totalorder %s15, 0
    %p36 = por %p34, %p35
    %p37 = scmp.ne.s32.totalorder %s23, %s24
    %p38 = scmp.eq.s32.totalorder %s16, 1
    %p39 = por %p37, %p38
    %p41 = scmp.ne.s32.totalorder %s24, %s40
    %p42 = scmp.eq.s32.totalorder %s16, 0
    %p43 = por %p41, %p42
    %s45 = sadd.s32 %s44, 1
    %p48 = scmp.eq.s32.totalorder %s10, 1
    %p49 = scmp.ne.s32.totalorder %s44, %s46
    %p50 = scmp.eq.s32.totalorder %s10, 0
    %p51 = por %p49, %p50
    %p52 = scmp.ne.s32.totalorder %s44, %s46
    %p53 = scmp.eq.s32.totalorder %s15, 1
    %p54 = por %p52, %p53
    %p55 = scmp.ne.s32.totalorder %s46, %s47
    %p56 = scmp.eq.s32.totalorder %s15, 0
    %p57 = por %p55, %p56
    %p58 = scmp.ne.s32.totalorder %s46, %s47
    %p59 = scmp.eq.s32.totalorder %s16, 1
    %p60 = por %p58, %p59
    %p62 = scmp.ne.s32.totalorder %s47, %s61
    %p63 = scmp.eq.s32.totalorder %s16, 0
    %p64 = por %p62, %p63
    %s66 = sadd.s32 %s65, 1
    %p69 = scmp.eq.s32.totalorder %s10, 1
    %p70 = scmp.ne.s32.totalorder %s65, %s67
    %p71 = scmp.eq.s32.totalorder %s10, 0
    %p72 = por %p70, %p71
    %p73 = scmp.ne.s32.totalorder %s65, %s67
    %p74 = scmp.eq.s32.totalorder %s15, 1
    %p75 = por %p73, %p74
    %p76 = scmp.ne.s32.totalorder %s67, %s68
    %p77 = scmp.eq.s32.totalorder %s15, 0
    %p78 = por %p76, %p77
    %p79 = scmp.ne.s32.totalorder %s67, %s68
    %p80 = scmp.eq.s32.totalorder %s16, 1
    %p81 = por %p79, %p80
    %p83 = scmp.ne.s32.totalorder %s68, %s82
    %p84 = scmp.eq.s32.totalorder %s16, 0
    %p85 = por %p83, %p84
    %s87 = sadd.s32 %s86, 1
    %p90 = scmp.eq.s32.totalorder %s10, 1
    %p91 = scmp.ne.s32.totalorder %s86, %s88
    %p92 = scmp.eq.s32.totalorder %s10, 0
    %p93 = por %p91, %p92
    %p94 = scmp.ne.s32.totalorder %s86, %s88
    %p95 = scmp.eq.s32.totalorder %s15, 1
    %p96 = por %p94, %p95
    %p97 = scmp.ne.s32.totalorder %s88, %s89
    %p98 = scmp.eq.s32.totalorder %s15, 0
    %p99 = por %p97, %p98
    %p100 = scmp.ne.s32.totalorder %s88, %s89
    %p101 = scmp.eq.s32.totalorder %s16, 1
    %p102 = por %p100, %p101
    %p104 = scmp.ne.s32.totalorder %s89, %s103
    %p105 = scmp.eq.s32.totalorder %s16, 0
    %p106 = por %p104, %p105
    %s107 = ssub.s32 %s10, %s17
    %p108 = scmp.eq.s32.totalorder %s107, 0
    %s110 = sadd.s32 %s109, 1
    %s111 = scalar_select %p108, %s109, %s110
    %p114 = pneg %p108
    %p115 = scmp.eq.s32.totalorder %s10, 1
    %p116 = por %p114, %p115
    %p117 = scmp.ne.s32.totalorder %s109, %s112
    %p118 = scmp.eq.s32.totalorder %s10, 0
    %p119 = por %p117, %p118
    %p120 = scmp.ne.s32.totalorder %s109, %s112
    %p121 = scmp.eq.s32.totalorder %s15, 1
    %p122 = por %p120, %p121
    %p123 = scmp.ne.s32.totalorder %s112, %s113
    %p124 = scmp.eq.s32.totalorder %s15, 0
    %p125 = por %p123, %p124
    %p126 = scmp.ne.s32.totalorder %s112, %s113
    %p127 = scmp.eq.s32.totalorder %s16, 1
    %p128 = por %p126, %p127
    %p130 = scmp.ne.s32.totalorder %s113, %s129
    %p131 = scmp.eq.s32.totalorder %s16, 0
    %p132 = por %p130, %p131
    %p133 = scmp.le.s32.totalorder 1, %s10
    %p134 = scmp.lt.s32.totalorder %s10, 3
    %p135 = pnand %p133, %p134
    %p136 = pneg %p135
    // Predicated region
    $region9: #{tpu_custom_call.1} parent=5 // pred_check
      _
    $region10: #{tpu_custom_call.1} parent=5 // pred_check_branch
      %138 = sbr.rel (%p135) target = $region12
    $region11: #{tpu_custom_call.1} parent=5 // pred_region
      %s139 = ssub.s32 %s10, 1
      // Predicated region
      $region13: #{tpu_custom_call.1} parent=11 // pred_check
        %p140 = pneg %p57
      $region14: #{tpu_custom_call.1} parent=11 // pred_check_branch
        %142 = sbr.rel (%p140) target = $region16
      $region15: #{tpu_custom_call.1} parent=11 // pred_region
        _
      $region16: #{tpu_custom_call.1} parent=11 // pred_fallthru
        _
      // Predicated region
      $region17: #{tpu_custom_call.1} parent=11 // pred_check
        %p143 = pneg %p78
      $region18: #{tpu_custom_call.1} parent=11 // pred_check_branch
        %145 = sbr.rel (%p143) target = $region20
      $region19: #{tpu_custom_call.1} parent=11 // pred_region
        _
      $region20: #{tpu_custom_call.1} parent=11 // pred_fallthru
        _
      // Predicated region
      $region21: #{tpu_custom_call.1} parent=11 // pred_check
        %p146 = pneg %p99
      $region22: #{tpu_custom_call.1} parent=11 // pred_check_branch
        %148 = sbr.rel (%p146) target = $region24
      $region23: #{tpu_custom_call.1} parent=11 // pred_region
        _
      $region24: #{tpu_custom_call.1} parent=11 // pred_fallthru
        _
    $region12: #{tpu_custom_call.1} parent=5 // pred_fallthru
      _
    %p149 = scmp.lt.s32.totalorder %s10, 2
    // Predicated region
    $region25: #{tpu_custom_call.1} parent=5 // pred_check
      %p150 = pneg %p149
    $region26: #{tpu_custom_call.1} parent=5 // pred_check_branch
      %152 = sbr.rel (%p150) target = $region28
    $region27: #{tpu_custom_call.1} parent=5 // pred_region
      // Predicated region
      $region29: #{tpu_custom_call.1} parent=27 // pred_check
        %p153 = pneg %p30
      $region30: #{tpu_custom_call.1} parent=27 // pred_check_branch
        %155 = sbr.rel (%p153) target = $region32
      $region31: #{tpu_custom_call.1} parent=27 // pred_region
        %s156 = smul.u32 8, %s10
        %p157 = scmp.lt.s32.totalorder %s156, 15
        %s158 = scalar_select %p157, %s156, 15
        %s159 = smul.addr %s158, 4
        %s160 = scalar_lea.vmem %s0, %s159
        %s161 = smul.u32 8, %s10
      $region32: #{tpu_custom_call.1} parent=27 // pred_fallthru
        _
    $region28: #{tpu_custom_call.1} parent=5 // pred_fallthru
      _
    %p162 = scmp.le.s32.totalorder 1, %s10
    %p163 = scmp.lt.s32.totalorder %s10, 3
    %p164 = pnand %p162, %p163
    %p165 = pneg %p164
    // Predicated region
    $region33: #{tpu_custom_call.1} parent=5 // pred_check
      _
    $region34: #{tpu_custom_call.1} parent=5 // pred_check_branch
      %167 = sbr.rel (%p164) target = $region36
    $region35: #{tpu_custom_call.1} parent=5 // pred_region
      %s168 = ssub.s32 %s10, 1
      %s169 = smul.u32 8, %s15
      %p170 = scmp.lt.s32.totalorder %s169, 15
      %s171 = scalar_select %p170, %s169, 15
      %s172 = smul.addr %s171, 4
      %s173 = scalar_lea.vmem %s0, %s172
      %p174 = pneg %p36
      %p175 = pneg %p33
      %p176 = pneg %p57
      %p177 = pneg %p54
      %p178 = pneg %p78
      %p179 = pneg %p75
      %p180 = pneg %p99
      %p181 = pneg %p96
      %p182 = pneg %p125
      %p183 = pneg %p122
      %s184 = smul.u32 8, %s15
      %p185 = scmp.lt.s32.totalorder %s184, 15
      %s186 = scalar_select %p185, %s184, 15
      %s187 = smul.addr %s186, 8
      %s188 = scalar_lea.vmem %s4, %s187
      %s189 = smul.u32 8, %s15
      %p190 = scmp.lt.s32.totalorder %s189, 15
      %s191 = scalar_select %p190, %s189, 15
      %s192 = smul.addr %s191, 4
      %s193 = scalar_lea.vmem %s0, %s192
      %s194 = smul.u32 8, %s15
      %s195 = smul.u32 8, %s15
      %p196 = scmp.lt.s32.totalorder %s195, 15
      %s197 = scalar_select %p196, %s195, 15
      %s198 = smul.addr %s197, 8
      %s199 = scalar_lea.vmem %s4, %s198
      %s200 = smul.u32 8, %s15
      %v202 = vld [vmem:[%s193] sm:$0xf]
      %v203 = vld [vmem:[%s193 + $0x4] sm:$0xf]
      %v204 = vld [vmem:[%s193 + $0x8] sm:$0xf]
      %v205 = vld [vmem:[%s193 + $0xc] sm:$0xf]
      %v206 = vld [vmem:[%s193 + $0x10] sm:$0xf]
      %v207 = vld [vmem:[%s193 + $0x14] sm:$0xf]
      %v208 = vld [vmem:[%s193 + $0x18] sm:$0xf]
      %v209 = vld [vmem:[%s193 + $0x1c] sm:$0xf]
      %v210 = vld [vmem:[%s1] sm:$0xff]
      %v211 = vld [vmem:[%s1 + $0x8] sm:$0xff]
      %v212 = vld [vmem:[%s1 + $0x10] sm:$0xff]
      %v213 = vld [vmem:[%s1 + $0x18] sm:$0xff]
      %v214 = vld [vmem:[%s1 + $0x20] sm:$0xff]
      %v215 = vld [vmem:[%s1 + $0x28] sm:$0xff]
      %v216 = vld [vmem:[%s1 + $0x30] sm:$0xff]
      %v217 = vld [vmem:[%s1 + $0x38] sm:$0xff]
      %v226 = vunpack.c.l.b16 %v202
      %v227 = vunpack.c.l.b16 %v203
      %v228 = vunpack.c.l.b16 %v204
      %v229 = vunpack.c.l.b16 %v205
      %v230 = vunpack.c.l.b16 %v206
      %v231 = vunpack.c.l.b16 %v207
      %v232 = vunpack.c.l.b16 %v208
      %v233 = vunpack.c.l.b16 %v209
      %v234 = vpack.c.b16 %v227, %v226
      %v235 = vpack.c.b16 %v229, %v228
      %v236 = vpack.c.b16 %v231, %v230
      %v237 = vpack.c.b16 %v233, %v232
      %v246 = vunpack.c.l.b16 %v210
      %v247 = vunpack.c.h.b16 %v210
      %v248 = vunpack.c.l.b16 %v211
      %v249 = vunpack.c.h.b16 %v211
      %v250 = vunpack.c.l.b16 %v212
      %v251 = vunpack.c.h.b16 %v212
      %v252 = vunpack.c.l.b16 %v213
      %v253 = vunpack.c.h.b16 %v213
      %v254 = vunpack.c.l.b16 %v214
      %v255 = vunpack.c.h.b16 %v214
      %v256 = vunpack.c.l.b16 %v215
      %v257 = vunpack.c.h.b16 %v215
      %v258 = vunpack.c.l.b16 %v216
      %v259 = vunpack.c.h.b16 %v216
      %v260 = vunpack.c.l.b16 %v217
      %v261 = vunpack.c.h.b16 %v217
      %v262 = vpack.c.b16 %v248, %v246
      %v263 = vpack.c.b16 %v249, %v247
      %v264 = vpack.c.b16 %v252, %v250
      %v265 = vpack.c.b16 %v253, %v251
      %v266 = vpack.c.b16 %v256, %v254
      %v267 = vpack.c.b16 %v257, %v255
      %v268 = vpack.c.b16 %v260, %v258
      %v269 = vpack.c.b16 %v261, %v259
      %vm278 = vcmask 523264
      %v280 = vsel %vm278, %v234, 0
      %v283 = vsel %vm278, %v235, 0
      %v286 = vsel %vm278, %v236, 0
      %v289 = vsel %vm278, %v237, 0
      %291 = vmatpush.bf16.msra.mxu0 0
      %292 = vmatpush.bf16.msra.mxu0 0
      %293 = vmatpush.bf16.msra.mxu0 0
      %294 = vmatpush.bf16.msra.mxu0 0
      %295 = vmatpush.bf16.msra.mxu0 %v268
      %296 = vmatpush.bf16.msra.mxu0 %v266
      %297 = vmatpush.bf16.msra.mxu0 %v264
      %298 = vmatpush.bf16.msra.mxu0 %v262
      %299 = vmatmul.bf16.gmra.mxu0 %v280
      %v300 = vpop.f32.mrf.mxu0
      %v301 = vadd.f32 0.0, %v300
      %v302 = vpop.f32.mrf.mxu0
      %v303 = vadd.f32 0.0, %v302
      %304 = vmatmul.bf16.gmra.mxu0 %v283
      %v305 = vpop.f32.mrf.mxu0
      %v306 = vadd.f32 0.0, %v305
      %v307 = vpop.f32.mrf.mxu0
      %v308 = vadd.f32 0.0, %v307
      %309 = vmatmul.bf16.gmra.mxu0 %v286
      %v310 = vpop.f32.mrf.mxu0
      %v311 = vadd.f32 0.0, %v310
      %v312 = vpop.f32.mrf.mxu0
      %v313 = vadd.f32 0.0, %v312
      %314 = vmatmul.bf16.gmra.mxu0 %v289
      %v315 = vpop.f32.mrf.mxu0
      %v316 = vadd.f32 0.0, %v315
      %v317 = vpop.f32.mrf.mxu0
      %v318 = vadd.f32 0.0, %v317
      %319 = vdwg.mxu0
      %320 = vmatpush.bf16.msra.mxu0 0
      %321 = vmatpush.bf16.msra.mxu0 0
      %322 = vmatpush.bf16.msra.mxu0 0
      %323 = vmatpush.bf16.msra.mxu0 0
      %324 = vmatpush.bf16.msra.mxu0 %v269
      %325 = vmatpush.bf16.msra.mxu0 %v267
      %326 = vmatpush.bf16.msra.mxu0 %v265
      %327 = vmatpush.bf16.msra.mxu0 %v263
      %328 = vmatmul.bf16.gmra.mxu0 %v280
      %v329 = vpop.f32.mrf.mxu0
      %v330 = vadd.f32 0.0, %v329
      %v331 = vpop.f32.mrf.mxu0
      %v332 = vadd.f32 0.0, %v331
      %333 = vmatmul.bf16.gmra.mxu0 %v283
      %v334 = vpop.f32.mrf.mxu0
      %v335 = vadd.f32 0.0, %v334
      %v336 = vpop.f32.mrf.mxu0
      %v337 = vadd.f32 0.0, %v336
      %338 = vmatmul.bf16.gmra.mxu0 %v286
      %v339 = vpop.f32.mrf.mxu0
      %v340 = vadd.f32 0.0, %v339
      %v341 = vpop.f32.mrf.mxu0
      %v342 = vadd.f32 0.0, %v341
      %343 = vmatmul.bf16.gmra.mxu0 %v289
      %v344 = vpop.f32.mrf.mxu0
      %v345 = vadd.f32 0.0, %v344
      %v346 = vpop.f32.mrf.mxu0
      %v347 = vadd.f32 0.0, %v346
      %348 = vdwg.mxu0
      %v349 = vpack.c.bf16 %v330, %v301
      %v350 = vpack.c.bf16 %v332, %v303
      %v351 = vpack.c.bf16 %v335, %v306
      %v352 = vpack.c.bf16 %v337, %v308
      %v353 = vpack.c.bf16 %v340, %v311
      %v354 = vpack.c.bf16 %v342, %v313
      %v355 = vpack.c.bf16 %v345, %v316
      %v356 = vpack.c.bf16 %v347, %v318
      %365 = vrot.lane.b32.xlu0 %v349, 112
      %v366 = vpop.permute.xlu0 %365
      %367 = vrot.lane.b32.xlu0 %v350, 112
      %v368 = vpop.permute.xlu0 %367
      %369 = vrot.lane.b32.xlu0 %v351, 112
      %v370 = vpop.permute.xlu0 %369
      %371 = vrot.lane.b32.xlu0 %v352, 112
      %v372 = vpop.permute.xlu0 %371
      %373 = vrot.lane.b32.xlu0 %v353, 112
      %v374 = vpop.permute.xlu0 %373
      %375 = vrot.lane.b32.xlu0 %v354, 112
      %v376 = vpop.permute.xlu0 %375
      %377 = vrot.lane.b32.xlu0 %v355, 112
      %v378 = vpop.permute.xlu0 %377
      %379 = vrot.lane.b32.xlu0 %v356, 112
      %v380 = vpop.permute.xlu0 %379
      %381 = vrot.lane.b32.xlu0 %v349, 96
      %v382 = vpop.permute.xlu0 %381
      %383 = vrot.lane.b32.xlu0 %v350, 96
      %v384 = vpop.permute.xlu0 %383
      %385 = vrot.lane.b32.xlu0 %v351, 96
      %v386 = vpop.permute.xlu0 %385
      %387 = vrot.lane.b32.xlu0 %v352, 96
      %v388 = vpop.permute.xlu0 %387
      %389 = vrot.lane.b32.xlu0 %v353, 96
      %v390 = vpop.permute.xlu0 %389
      %391 = vrot.lane.b32.xlu0 %v354, 96
      %v392 = vpop.permute.xlu0 %391
      %393 = vrot.lane.b32.xlu0 %v355, 96
      %v394 = vpop.permute.xlu0 %393
      %395 = vrot.lane.b32.xlu0 %v356, 96
      %v396 = vpop.permute.xlu0 %395
      %397 = vrot.lane.b32.xlu0 %v349, 80
      %v398 = vpop.permute.xlu0 %397
      %399 = vrot.lane.b32.xlu0 %v350, 80
      %v400 = vpop.permute.xlu0 %399
      %401 = vrot.lane.b32.xlu0 %v351, 80
      %v402 = vpop.permute.xlu0 %401
      %403 = vrot.lane.b32.xlu0 %v352, 80
      %v404 = vpop.permute.xlu0 %403
      %405 = vrot.lane.b32.xlu0 %v353, 80
      %v406 = vpop.permute.xlu0 %405
      %407 = vrot.lane.b32.xlu0 %v354, 80
      %v408 = vpop.permute.xlu0 %407
      %409 = vrot.lane.b32.xlu0 %v355, 80
      %v410 = vpop.permute.xlu0 %409
      %411 = vrot.lane.b32.xlu0 %v356, 80
      %v412 = vpop.permute.xlu0 %411
      %v413 = vrot.slane %v349, 4
      %v414 = vrot.slane %v350, 4
      %v415 = vrot.slane %v351, 4
      %v416 = vrot.slane %v352, 4
      %v417 = vrot.slane %v353, 4
      %v418 = vrot.slane %v354, 4
      %v419 = vrot.slane %v355, 4
      %v420 = vrot.slane %v356, 4
      %v421 = vrot.slane %v366, 4
      %v422 = vrot.slane %v368, 4
      %v423 = vrot.slane %v370, 4
      %v424 = vrot.slane %v372, 4
      %v425 = vrot.slane %v374, 4
      %v426 = vrot.slane %v376, 4
      %v427 = vrot.slane %v378, 4
      %v428 = vrot.slane %v380, 4
      %v429 = vrot.slane %v382, 4
      %v430 = vrot.slane %v384, 4
      %v431 = vrot.slane %v386, 4
      %v432 = vrot.slane %v388, 4
      %v433 = vrot.slane %v390, 4
      %v434 = vrot.slane %v392, 4
      %v435 = vrot.slane %v394, 4
      %v436 = vrot.slane %v396, 4
      %v437 = vrot.slane %v398, 4
      %v438 = vrot.slane %v400, 4
      %v439 = vrot.slane %v402, 4
      %v440 = vrot.slane %v404, 4
      %v441 = vrot.slane %v406, 4
      %v442 = vrot.slane %v408, 4
      %v443 = vrot.slane %v410, 4
      %v444 = vrot.slane %v412, 4
      %v445 = vunpack.c.l.b16 %v349
      %v446 = vpack.c.b16 %v445, %v445
      %447 = vrot.lane.b32.xlu0 %v446, 64
      %v448 = vpop.permute.xlu0 %447
      %vm449 = vcmask 130048
      %v451 = vsel %vm449, %v349, 0
      %v454 = vsel %vm449, %v448, 0
      %456 = vmatpush.bf16.xpose.msra.mxu0 0
      %457 = vmatpush.bf16.xpose.msra.mxu0 0
      %458 = vmatpush.bf16.xpose.msra.mxu0 0
      %459 = vmatpush.bf16.xpose.msra.mxu0 0
      %460 = vmatpush.bf16.xpose.msra.mxu0 0
      %461 = vmatpush.bf16.xpose.msra.mxu0 0
      %462 = vmatpush.bf16.xpose.msra.mxu0 0
      %463 = vmatpush.bf16.xpose.msra.mxu0 %v454
      %464 = vmatmul.bf16.gmra.mxu0 %v451
      %v465 = vpop.f32.mrf.mxu0
      %v466 = vadd.f32 0.0, %v465
      %v467 = vpop.f32.mrf.mxu0
      %468 = vdwg.mxu0
      %v469 = vunpack.c.l.b16 %v350
      %v470 = vpack.c.b16 %v469, %v469
      %471 = vrot.lane.b32.xlu0 %v470, 64
      %v472 = vpop.permute.xlu0 %471
      %v474 = vsel %vm449, %v350, 0
      %v477 = vsel %vm449, %v472, 0
      %479 = vmatpush.bf16.xpose.msra.mxu0 0
      %480 = vmatpush.bf16.xpose.msra.mxu0 0
      %481 = vmatpush.bf16.xpose.msra.mxu0 0
      %482 = vmatpush.bf16.xpose.msra.mxu0 0
      %483 = vmatpush.bf16.xpose.msra.mxu0 0
      %484 = vmatpush.bf16.xpose.msra.mxu0 0
      %485 = vmatpush.bf16.xpose.msra.mxu0 0
      %486 = vmatpush.bf16.xpose.msra.mxu0 %v477
      %487 = vmatmul.bf16.gmra.mxu0 %v474
      %v488 = vpop.f32.mrf.mxu0
      %v489 = vadd.f32 0.0, %v488
      %v490 = vpop.f32.mrf.mxu0
      %491 = vdwg.mxu0
      %v492 = vunpack.c.l.b16 %v351
      %v493 = vpack.c.b16 %v492, %v492
      %494 = vrot.lane.b32.xlu0 %v493, 64
      %v495 = vpop.permute.xlu0 %494
      %v497 = vsel %vm449, %v351, 0
      %v500 = vsel %vm449, %v495, 0
      %502 = vmatpush.bf16.xpose.msra.mxu0 0
      %503 = vmatpush.bf16.xpose.msra.mxu0 0
      %504 = vmatpush.bf16.xpose.msra.mxu0 0
      %505 = vmatpush.bf16.xpose.msra.mxu0 0
      %506 = vmatpush.bf16.xpose.msra.mxu0 0
      %507 = vmatpush.bf16.xpose.msra.mxu0 0
      %508 = vmatpush.bf16.xpose.msra.mxu0 0
      %509 = vmatpush.bf16.xpose.msra.mxu0 %v500
      %510 = vmatmul.bf16.gmra.mxu0 %v497
      %v511 = vpop.f32.mrf.mxu0
      %v512 = vadd.f32 0.0, %v511
      %v513 = vpop.f32.mrf.mxu0
      %514 = vdwg.mxu0
      %v515 = vunpack.c.l.b16 %v352
      %v516 = vpack.c.b16 %v515, %v515
      %517 = vrot.lane.b32.xlu0 %v516, 64
      %v518 = vpop.permute.xlu0 %517
      %v520 = vsel %vm449, %v352, 0
      %v523 = vsel %vm449, %v518, 0
      %525 = vmatpush.bf16.xpose.msra.mxu0 0
      %526 = vmatpush.bf16.xpose.msra.mxu0 0
      %527 = vmatpush.bf16.xpose.msra.mxu0 0
      %528 = vmatpush.bf16.xpose.msra.mxu0 0
      %529 = vmatpush.bf16.xpose.msra.mxu0 0
      %530 = vmatpush.bf16.xpose.msra.mxu0 0
      %531 = vmatpush.bf16.xpose.msra.mxu0 0
      %532 = vmatpush.bf16.xpose.msra.mxu0 %v523
      %533 = vmatmul.bf16.gmra.mxu0 %v520
      %v534 = vpop.f32.mrf.mxu0
      %v535 = vadd.f32 0.0, %v534
      %v536 = vpop.f32.mrf.mxu0
      %537 = vdwg.mxu0
      %v538 = vunpack.c.l.b16 %v353
      %v539 = vpack.c.b16 %v538, %v538
      %540 = vrot.lane.b32.xlu0 %v539, 64
      %v541 = vpop.permute.xlu0 %540
      %v543 = vsel %vm449, %v353, 0
      %v546 = vsel %vm449, %v541, 0
      %548 = vmatpush.bf16.xpose.msra.mxu0 0
      %549 = vmatpush.bf16.xpose.msra.mxu0 0
      %550 = vmatpush.bf16.xpose.msra.mxu0 0
      %551 = vmatpush.bf16.xpose.msra.mxu0 0
      %552 = vmatpush.bf16.xpose.msra.mxu0 0
      %553 = vmatpush.bf16.xpose.msra.mxu0 0
      %554 = vmatpush.bf16.xpose.msra.mxu0 0
      %555 = vmatpush.bf16.xpose.msra.mxu0 %v546
      %556 = vmatmul.bf16.gmra.mxu0 %v543
      %v557 = vpop.f32.mrf.mxu0
      %v558 = vadd.f32 0.0, %v557
      %v559 = vpop.f32.mrf.mxu0
      %560 = vdwg.mxu0
      %v561 = vunpack.c.l.b16 %v354
      %v562 = vpack.c.b16 %v561, %v561
      %563 = vrot.lane.b32.xlu0 %v562, 64
      %v564 = vpop.permute.xlu0 %563
      %v566 = vsel %vm449, %v354, 0
      %v569 = vsel %vm449, %v564, 0
      %571 = vmatpush.bf16.xpose.msra.mxu0 0
      %572 = vmatpush.bf16.xpose.msra.mxu0 0
      %573 = vmatpush.bf16.xpose.msra.mxu0 0
      %574 = vmatpush.bf16.xpose.msra.mxu0 0
      %575 = vmatpush.bf16.xpose.msra.mxu0 0
      %576 = vmatpush.bf16.xpose.msra.mxu0 0
      %577 = vmatpush.bf16.xpose.msra.mxu0 0
      %578 = vmatpush.bf16.xpose.msra.mxu0 %v569
      %579 = vmatmul.bf16.gmra.mxu0 %v566
      %v580 = vpop.f32.mrf.mxu0
      %v581 = vadd.f32 0.0, %v580
      %v582 = vpop.f32.mrf.mxu0
      %583 = vdwg.mxu0
      %v584 = vunpack.c.l.b16 %v355
      %v585 = vpack.c.b16 %v584, %v584
      %586 = vrot.lane.b32.xlu0 %v585, 64
      %v587 = vpop.permute.xlu0 %586
      %v589 = vsel %vm449, %v355, 0
      %v592 = vsel %vm449, %v587, 0
      %594 = vmatpush.bf16.xpose.msra.mxu0 0
      %595 = vmatpush.bf16.xpose.msra.mxu0 0
      %596 = vmatpush.bf16.xpose.msra.mxu0 0
      %597 = vmatpush.bf16.xpose.msra.mxu0 0
      %598 = vmatpush.bf16.xpose.msra.mxu0 0
      %599 = vmatpush.bf16.xpose.msra.mxu0 0
      %600 = vmatpush.bf16.xpose.msra.mxu0 0
      %601 = vmatpush.bf16.xpose.msra.mxu0 %v592
      %602 = vmatmul.bf16.gmra.mxu0 %v589
      %v603 = vpop.f32.mrf.mxu0
      %v604 = vadd.f32 0.0, %v603
      %v605 = vpop.f32.mrf.mxu0
      %606 = vdwg.mxu0
      %v607 = vunpack.c.l.b16 %v356
      %v608 = vpack.c.b16 %v607, %v607
      %609 = vrot.lane.b32.xlu0 %v608, 64
      %v610 = vpop.permute.xlu0 %609
      %v612 = vsel %vm449, %v356, 0
      %v615 = vsel %vm449, %v610, 0
      %617 = vmatpush.bf16.xpose.msra.mxu0 0
      %618 = vmatpush.bf16.xpose.msra.mxu0 0
      %619 = vmatpush.bf16.xpose.msra.mxu0 0
      %620 = vmatpush.bf16.xpose.msra.mxu0 0
      %621 = vmatpush.bf16.xpose.msra.mxu0 0
      %622 = vmatpush.bf16.xpose.msra.mxu0 0
      %623 = vmatpush.bf16.xpose.msra.mxu0 0
      %624 = vmatpush.bf16.xpose.msra.mxu0 %v615
      %625 = vmatmul.bf16.gmra.mxu0 %v612
      %v626 = vpop.f32.mrf.mxu0
      %v627 = vadd.f32 0.0, %v626
      %v628 = vpop.f32.mrf.mxu0
      %629 = vdwg.mxu0
      %v630 = vunpack.c.l.b16 %v366
      %v631 = vpack.c.b16 %v630, %v630
      %632 = vrot.lane.b32.xlu0 %v631, 64
      %v633 = vpop.permute.xlu0 %632
      %v635 = vsel %vm449, %v366, 0
      %v638 = vsel %vm449, %v633, 0
      %640 = vmatpush.bf16.xpose.msra.mxu0 0
      %641 = vmatpush.bf16.xpose.msra.mxu0 0
      %642 = vmatpush.bf16.xpose.msra.mxu0 0
      %643 = vmatpush.bf16.xpose.msra.mxu0 0
      %644 = vmatpush.bf16.xpose.msra.mxu0 0
      %645 = vmatpush.bf16.xpose.msra.mxu0 0
      %646 = vmatpush.bf16.xpose.msra.mxu0 0
      %647 = vmatpush.bf16.xpose.msra.mxu0 %v638
      %648 = vmatmul.bf16.gmra.mxu0 %v635
      %v649 = vpop.f32.mrf.mxu0
      %v650 = vadd.f32 0.0, %v649
      %v651 = vpop.f32.mrf.mxu0
      %652 = vdwg.mxu0
      %v653 = vunpack.c.l.b16 %v368
      %v654 = vpack.c.b16 %v653, %v653
      %655 = vrot.lane.b32.xlu0 %v654, 64
      %v656 = vpop.permute.xlu0 %655
      %v658 = vsel %vm449, %v368, 0
      %v661 = vsel %vm449, %v656, 0
      %663 = vmatpush.bf16.xpose.msra.mxu0 0
      %664 = vmatpush.bf16.xpose.msra.mxu0 0
      %665 = vmatpush.bf16.xpose.msra.mxu0 0
      %666 = vmatpush.bf16.xpose.msra.mxu0 0
      %667 = vmatpush.bf16.xpose.msra.mxu0 0
      %668 = vmatpush.bf16.xpose.msra.mxu0 0
      %669 = vmatpush.bf16.xpose.msra.mxu0 0
      %670 = vmatpush.bf16.xpose.msra.mxu0 %v661
      %671 = vmatmul.bf16.gmra.mxu0 %v658
      %v672 = vpop.f32.mrf.mxu0
      %v673 = vadd.f32 0.0, %v672
      %v674 = vpop.f32.mrf.mxu0
      %675 = vdwg.mxu0
      %v676 = vunpack.c.l.b16 %v370
      %v677 = vpack.c.b16 %v676, %v676
      %678 = vrot.lane.b32.xlu0 %v677, 64
      %v679 = vpop.permute.xlu0 %678
      %v681 = vsel %vm449, %v370, 0
      %v684 = vsel %vm449, %v679, 0
      %686 = vmatpush.bf16.xpose.msra.mxu0 0
      %687 = vmatpush.bf16.xpose.msra.mxu0 0
      %688 = vmatpush.bf16.xpose.msra.mxu0 0
      %689 = vmatpush.bf16.xpose.msra.mxu0 0
      %690 = vmatpush.bf16.xpose.msra.mxu0 0
      %691 = vmatpush.bf16.xpose.msra.mxu0 0
      %692 = vmatpush.bf16.xpose.msra.mxu0 0
      %693 = vmatpush.bf16.xpose.msra.mxu0 %v684
      %694 = vmatmul.bf16.gmra.mxu0 %v681
      %v695 = vpop.f32.mrf.mxu0
      %v696 = vadd.f32 0.0, %v695
      %v697 = vpop.f32.mrf.mxu0
      %698 = vdwg.mxu0
      %v699 = vunpack.c.l.b16 %v372
      %v700 = vpack.c.b16 %v699, %v699
      %701 = vrot.lane.b32.xlu0 %v700, 64
      %v702 = vpop.permute.xlu0 %701
      %v704 = vsel %vm449, %v372, 0
      %v707 = vsel %vm449, %v702, 0
      %709 = vmatpush.bf16.xpose.msra.mxu0 0
      %710 = vmatpush.bf16.xpose.msra.mxu0 0
      %711 = vmatpush.bf16.xpose.msra.mxu0 0
      %712 = vmatpush.bf16.xpose.msra.mxu0 0
      %713 = vmatpush.bf16.xpose.msra.mxu0 0
      %714 = vmatpush.bf16.xpose.msra.mxu0 0
      %715 = vmatpush.bf16.xpose.msra.mxu0 0
      %716 = vmatpush.bf16.xpose.msra.mxu0 %v707
      %717 = vmatmul.bf16.gmra.mxu0 %v704
      %v718 = vpop.f32.mrf.mxu0
      %v719 = vadd.f32 0.0, %v718
      %v720 = vpop.f32.mrf.mxu0
      %721 = vdwg.mxu0
      %v722 = vunpack.c.l.b16 %v374
      %v723 = vpack.c.b16 %v722, %v722
      %724 = vrot.lane.b32.xlu0 %v723, 64
      %v725 = vpop.permute.xlu0 %724
      %v727 = vsel %vm449, %v374, 0
      %v730 = vsel %vm449, %v725, 0
      %732 = vmatpush.bf16.xpose.msra.mxu0 0
      %733 = vmatpush.bf16.xpose.msra.mxu0 0
      %734 = vmatpush.bf16.xpose.msra.mxu0 0
      %735 = vmatpush.bf16.xpose.msra.mxu0 0
      %736 = vmatpush.bf16.xpose.msra.mxu0 0
      %737 = vmatpush.bf16.xpose.msra.mxu0 0
      %738 = vmatpush.bf16.xpose.msra.mxu0 0
      %739 = vmatpush.bf16.xpose.msra.mxu0 %v730
      %740 = vmatmul.bf16.gmra.mxu0 %v727
      %v741 = vpop.f32.mrf.mxu0
      %v742 = vadd.f32 0.0, %v741
      %v743 = vpop.f32.mrf.mxu0
      %744 = vdwg.mxu0
      %v745 = vunpack.c.l.b16 %v376
      %v746 = vpack.c.b16 %v745, %v745
      %747 = vrot.lane.b32.xlu0 %v746, 64
      %v748 = vpop.permute.xlu0 %747
      %v750 = vsel %vm449, %v376, 0
      %v753 = vsel %vm449, %v748, 0
      %755 = vmatpush.bf16.xpose.msra.mxu0 0
      %756 = vmatpush.bf16.xpose.msra.mxu0 0
      %757 = vmatpush.bf16.xpose.msra.mxu0 0
      %758 = vmatpush.bf16.xpose.msra.mxu0 0
      %759 = vmatpush.bf16.xpose.msra.mxu0 0
      %760 = vmatpush.bf16.xpose.msra.mxu0 0
      %761 = vmatpush.bf16.xpose.msra.mxu0 0
      %762 = vmatpush.bf16.xpose.msra.mxu0 %v753
      %763 = vmatmul.bf16.gmra.mxu0 %v750
      %v764 = vpop.f32.mrf.mxu0
      %v765 = vadd.f32 0.0, %v764
      %v766 = vpop.f32.mrf.mxu0
      %767 = vdwg.mxu0
      %v768 = vunpack.c.l.b16 %v378
      %v769 = vpack.c.b16 %v768, %v768
      %770 = vrot.lane.b32.xlu0 %v769, 64
      %v771 = vpop.permute.xlu0 %770
      %v773 = vsel %vm449, %v378, 0
      %v776 = vsel %vm449, %v771, 0
      %778 = vmatpush.bf16.xpose.msra.mxu0 0
      %779 = vmatpush.bf16.xpose.msra.mxu0 0
      %780 = vmatpush.bf16.xpose.msra.mxu0 0
      %781 = vmatpush.bf16.xpose.msra.mxu0 0
      %782 = vmatpush.bf16.xpose.msra.mxu0 0
      %783 = vmatpush.bf16.xpose.msra.mxu0 0
      %784 = vmatpush.bf16.xpose.msra.mxu0 0
      %785 = vmatpush.bf16.xpose.msra.mxu0 %v776
      %786 = vmatmul.bf16.gmra.mxu0 %v773
      %v787 = vpop.f32.mrf.mxu0
      %v788 = vadd.f32 0.0, %v787
      %v789 = vpop.f32.mrf.mxu0
      %790 = vdwg.mxu0
      %v791 = vunpack.c.l.b16 %v380
      %v792 = vpack.c.b16 %v791, %v791
      %793 = vrot.lane.b32.xlu0 %v792, 64
      %v794 = vpop.permute.xlu0 %793
      %v796 = vsel %vm449, %v380, 0
      %v799 = vsel %vm449, %v794, 0
      %801 = vmatpush.bf16.xpose.msra.mxu0 0
      %802 = vmatpush.bf16.xpose.msra.mxu0 0
      %803 = vmatpush.bf16.xpose.msra.mxu0 0
      %804 = vmatpush.bf16.xpose.msra.mxu0 0
      %805 = vmatpush.bf16.xpose.msra.mxu0 0
      %806 = vmatpush.bf16.xpose.msra.mxu0 0
      %807 = vmatpush.bf16.xpose.msra.mxu0 0
      %808 = vmatpush.bf16.xpose.msra.mxu0 %v799
      %809 = vmatmul.bf16.gmra.mxu0 %v796
      %v810 = vpop.f32.mrf.mxu0
      %v811 = vadd.f32 0.0, %v810
      %v812 = vpop.f32.mrf.mxu0
      %813 = vdwg.mxu0
      %v814 = vunpack.c.l.b16 %v382
      %v815 = vpack.c.b16 %v814, %v814
      %816 = vrot.lane.b32.xlu0 %v815, 64
      %v817 = vpop.permute.xlu0 %816
      %v819 = vsel %vm449, %v382, 0
      %v822 = vsel %vm449, %v817, 0
      %824 = vmatpush.bf16.xpose.msra.mxu0 0
      %825 = vmatpush.bf16.xpose.msra.mxu0 0
      %826 = vmatpush.bf16.xpose.msra.mxu0 0
      %827 = vmatpush.bf16.xpose.msra.mxu0 0
      %828 = vmatpush.bf16.xpose.msra.mxu0 0
      %829 = vmatpush.bf16.xpose.msra.mxu0 0
      %830 = vmatpush.bf16.xpose.msra.mxu0 0
      %831 = vmatpush.bf16.xpose.msra.mxu0 %v822
      %832 = vmatmul.bf16.gmra.mxu0 %v819
      %v833 = vpop.f32.mrf.mxu0
      %v834 = vadd.f32 0.0, %v833
      %v835 = vpop.f32.mrf.mxu0
      %836 = vdwg.mxu0
      %v837 = vunpack.c.l.b16 %v384
      %v838 = vpack.c.b16 %v837, %v837
      %839 = vrot.lane.b32.xlu0 %v838, 64
      %v840 = vpop.permute.xlu0 %839
      %v842 = vsel %vm449, %v384, 0
      %v845 = vsel %vm449, %v840, 0
      %847 = vmatpush.bf16.xpose.msra.mxu0 0
      %848 = vmatpush.bf16.xpose.msra.mxu0 0
      %849 = vmatpush.bf16.xpose.msra.mxu0 0
      %850 = vmatpush.bf16.xpose.msra.mxu0 0
      %851 = vmatpush.bf16.xpose.msra.mxu0 0
      %852 = vmatpush.bf16.xpose.msra.mxu0 0
      %853 = vmatpush.bf16.xpose.msra.mxu0 0
      %854 = vmatpush.bf16.xpose.msra.mxu0 %v845
      %855 = vmatmul.bf16.gmra.mxu0 %v842
      %v856 = vpop.f32.mrf.mxu0
      %v857 = vadd.f32 0.0, %v856
      %v858 = vpop.f32.mrf.mxu0
      %859 = vdwg.mxu0
      %v860 = vunpack.c.l.b16 %v386
      %v861 = vpack.c.b16 %v860, %v860
      %862 = vrot.lane.b32.xlu0 %v861, 64
      %v863 = vpop.permute.xlu0 %862
      %v865 = vsel %vm449, %v386, 0
      %v868 = vsel %vm449, %v863, 0
      %870 = vmatpush.bf16.xpose.msra.mxu0 0
      %871 = vmatpush.bf16.xpose.msra.mxu0 0
      %872 = vmatpush.bf16.xpose.msra.mxu0 0
      %873 = vmatpush.bf16.xpose.msra.mxu0 0
      %874 = vmatpush.bf16.xpose.msra.mxu0 0
      %875 = vmatpush.bf16.xpose.msra.mxu0 0
      %876 = vmatpush.bf16.xpose.msra.mxu0 0
      %877 = vmatpush.bf16.xpose.msra.mxu0 %v868
      %878 = vmatmul.bf16.gmra.mxu0 %v865
      %v879 = vpop.f32.mrf.mxu0
      %v880 = vadd.f32 0.0, %v879
      %v881 = vpop.f32.mrf.mxu0
      %882 = vdwg.mxu0
      %v883 = vunpack.c.l.b16 %v388
      %v884 = vpack.c.b16 %v883, %v883
      %885 = vrot.lane.b32.xlu0 %v884, 64
      %v886 = vpop.permute.xlu0 %885
      %v888 = vsel %vm449, %v388, 0
      %v891 = vsel %vm449, %v886, 0
      %893 = vmatpush.bf16.xpose.msra.mxu0 0
      %894 = vmatpush.bf16.xpose.msra.mxu0 0
      %895 = vmatpush.bf16.xpose.msra.mxu0 0
      %896 = vmatpush.bf16.xpose.msra.mxu0 0
      %897 = vmatpush.bf16.xpose.msra.mxu0 0
      %898 = vmatpush.bf16.xpose.msra.mxu0 0
      %899 = vmatpush.bf16.xpose.msra.mxu0 0
      %900 = vmatpush.bf16.xpose.msra.mxu0 %v891
      %901 = vmatmul.bf16.gmra.mxu0 %v888
      %v902 = vpop.f32.mrf.mxu0
      %v903 = vadd.f32 0.0, %v902
      %v904 = vpop.f32.mrf.mxu0
      %905 = vdwg.mxu0
      %v906 = vunpack.c.l.b16 %v390
      %v907 = vpack.c.b16 %v906, %v906
      %908 = vrot.lane.b32.xlu0 %v907, 64
      %v909 = vpop.permute.xlu0 %908
      %v911 = vsel %vm449, %v390, 0
      %v914 = vsel %vm449, %v909, 0
      %916 = vmatpush.bf16.xpose.msra.mxu0 0
      %917 = vmatpush.bf16.xpose.msra.mxu0 0
      %918 = vmatpush.bf16.xpose.msra.mxu0 0
      %919 = vmatpush.bf16.xpose.msra.mxu0 0
      %920 = vmatpush.bf16.xpose.msra.mxu0 0
      %921 = vmatpush.bf16.xpose.msra.mxu0 0
      %922 = vmatpush.bf16.xpose.msra.mxu0 0
      %923 = vmatpush.bf16.xpose.msra.mxu0 %v914
      %924 = vmatmul.bf16.gmra.mxu0 %v911
      %v925 = vpop.f32.mrf.mxu0
      %v926 = vadd.f32 0.0, %v925
      %v927 = vpop.f32.mrf.mxu0
      %928 = vdwg.mxu0
      %v929 = vunpack.c.l.b16 %v392
      %v930 = vpack.c.b16 %v929, %v929
      %931 = vrot.lane.b32.xlu0 %v930, 64
      %v932 = vpop.permute.xlu0 %931
      %v934 = vsel %vm449, %v392, 0
      %v937 = vsel %vm449, %v932, 0
      %939 = vmatpush.bf16.xpose.msra.mxu0 0
      %940 = vmatpush.bf16.xpose.msra.mxu0 0
      %941 = vmatpush.bf16.xpose.msra.mxu0 0
      %942 = vmatpush.bf16.xpose.msra.mxu0 0
      %943 = vmatpush.bf16.xpose.msra.mxu0 0
      %944 = vmatpush.bf16.xpose.msra.mxu0 0
      %945 = vmatpush.bf16.xpose.msra.mxu0 0
      %946 = vmatpush.bf16.xpose.msra.mxu0 %v937
      %947 = vmatmul.bf16.gmra.mxu0 %v934
      %v948 = vpop.f32.mrf.mxu0
      %v949 = vadd.f32 0.0, %v948
      %v950 = vpop.f32.mrf.mxu0
      %951 = vdwg.mxu0
      %v952 = vunpack.c.l.b16 %v394
      %v953 = vpack.c.b16 %v952, %v952
      %954 = vrot.lane.b32.xlu0 %v953, 64
      %v955 = vpop.permute.xlu0 %954
      %v957 = vsel %vm449, %v394, 0
      %v960 = vsel %vm449, %v955, 0
      %962 = vmatpush.bf16.xpose.msra.mxu0 0
      %963 = vmatpush.bf16.xpose.msra.mxu0 0
      %964 = vmatpush.bf16.xpose.msra.mxu0 0
      %965 = vmatpush.bf16.xpose.msra.mxu0 0
      %966 = vmatpush.bf16.xpose.msra.mxu0 0
      %967 = vmatpush.bf16.xpose.msra.mxu0 0
      %968 = vmatpush.bf16.xpose.msra.mxu0 0
      %969 = vmatpush.bf16.xpose.msra.mxu0 %v960
      %970 = vmatmul.bf16.gmra.mxu0 %v957
      %v971 = vpop.f32.mrf.mxu0
      %v972 = vadd.f32 0.0, %v971
      %v973 = vpop.f32.mrf.mxu0
      %974 = vdwg.mxu0
      %v975 = vunpack.c.l.b16 %v396
      %v976 = vpack.c.b16 %v975, %v975
      %977 = vrot.lane.b32.xlu0 %v976, 64
      %v978 = vpop.permute.xlu0 %977
      %v980 = vsel %vm449, %v396, 0
      %v983 = vsel %vm449, %v978, 0
      %985 = vmatpush.bf16.xpose.msra.mxu0 0
      %986 = vmatpush.bf16.xpose.msra.mxu0 0
      %987 = vmatpush.bf16.xpose.msra.mxu0 0
      %988 = vmatpush.bf16.xpose.msra.mxu0 0
      %989 = vmatpush.bf16.xpose.msra.mxu0 0
      %990 = vmatpush.bf16.xpose.msra.mxu0 0
      %991 = vmatpush.bf16.xpose.msra.mxu0 0
      %992 = vmatpush.bf16.xpose.msra.mxu0 %v983
      %993 = vmatmul.bf16.gmra.mxu0 %v980
      %v994 = vpop.f32.mrf.mxu0
      %v995 = vadd.f32 0.0, %v994
      %v996 = vpop.f32.mrf.mxu0
      %997 = vdwg.mxu0
      %v998 = vunpack.c.l.b16 %v398
      %v999 = vpack.c.b16 %v998, %v998
      %1000 = vrot.lane.b32.xlu0 %v999, 64
      %v1001 = vpop.permute.xlu0 %1000
      %v1003 = vsel %vm449, %v398, 0
      %v1006 = vsel %vm449, %v1001, 0
      %1008 = vmatpush.bf16.xpose.msra.mxu0 0
      %1009 = vmatpush.bf16.xpose.msra.mxu0 0
      %1010 = vmatpush.bf16.xpose.msra.mxu0 0
      %1011 = vmatpush.bf16.xpose.msra.mxu0 0
      %1012 = vmatpush.bf16.xpose.msra.mxu0 0
      %1013 = vmatpush.bf16.xpose.msra.mxu0 0
      %1014 = vmatpush.bf16.xpose.msra.mxu0 0
      %1015 = vmatpush.bf16.xpose.msra.mxu0 %v1006
      %1016 = vmatmul.bf16.gmra.mxu0 %v1003
      %v1017 = vpop.f32.mrf.mxu0
      %v1018 = vadd.f32 0.0, %v1017
      %v1019 = vpop.f32.mrf.mxu0
      %1020 = vdwg.mxu0
      %v1021 = vunpack.c.l.b16 %v400
      %v1022 = vpack.c.b16 %v1021, %v1021
      %1023 = vrot.lane.b32.xlu0 %v1022, 64
      %v1024 = vpop.permute.xlu0 %1023
      %v1026 = vsel %vm449, %v400, 0
      %v1029 = vsel %vm449, %v1024, 0
      %1031 = vmatpush.bf16.xpose.msra.mxu0 0
      %1032 = vmatpush.bf16.xpose.msra.mxu0 0
      %1033 = vmatpush.bf16.xpose.msra.mxu0 0
      %1034 = vmatpush.bf16.xpose.msra.mxu0 0
      %1035 = vmatpush.bf16.xpose.msra.mxu0 0
      %1036 = vmatpush.bf16.xpose.msra.mxu0 0
      %1037 = vmatpush.bf16.xpose.msra.mxu0 0
      %1038 = vmatpush.bf16.xpose.msra.mxu0 %v1029
      %1039 = vmatmul.bf16.gmra.mxu0 %v1026
      %v1040 = vpop.f32.mrf.mxu0
      %v1041 = vadd.f32 0.0, %v1040
      %v1042 = vpop.f32.mrf.mxu0
      %1043 = vdwg.mxu0
      %v1044 = vunpack.c.l.b16 %v402
      %v1045 = vpack.c.b16 %v1044, %v1044
      %1046 = vrot.lane.b32.xlu0 %v1045, 64
      %v1047 = vpop.permute.xlu0 %1046
      %v1049 = vsel %vm449, %v402, 0
      %v1052 = vsel %vm449, %v1047, 0
      %1054 = vmatpush.bf16.xpose.msra.mxu0 0
      %1055 = vmatpush.bf16.xpose.msra.mxu0 0
      %1056 = vmatpush.bf16.xpose.msra.mxu0 0
      %1057 = vmatpush.bf16.xpose.msra.mxu0 0
      %1058 = vmatpush.bf16.xpose.msra.mxu0 0
      %1059 = vmatpush.bf16.xpose.msra.mxu0 0
      %1060 = vmatpush.bf16.xpose.msra.mxu0 0
      %1061 = vmatpush.bf16.xpose.msra.mxu0 %v1052
      %1062 = vmatmul.bf16.gmra.mxu0 %v1049
      %v1063 = vpop.f32.mrf.mxu0
      %v1064 = vadd.f32 0.0, %v1063
      %v1065 = vpop.f32.mrf.mxu0
      %1066 = vdwg.mxu0
      %v1067 = vunpack.c.l.b16 %v404
      %v1068 = vpack.c.b16 %v1067, %v1067
      %1069 = vrot.lane.b32.xlu0 %v1068, 64
      %v1070 = vpop.permute.xlu0 %1069
      %v1072 = vsel %vm449, %v404, 0
      %v1075 = vsel %vm449, %v1070, 0
      %1077 = vmatpush.bf16.xpose.msra.mxu0 0
      %1078 = vmatpush.bf16.xpose.msra.mxu0 0
      %1079 = vmatpush.bf16.xpose.msra.mxu0 0
      %1080 = vmatpush.bf16.xpose.msra.mxu0 0
      %1081 = vmatpush.bf16.xpose.msra.mxu0 0
      %1082 = vmatpush.bf16.xpose.msra.mxu0 0
      %1083 = vmatpush.bf16.xpose.msra.mxu0 0
      %1084 = vmatpush.bf16.xpose.msra.mxu0 %v1075
      %1085 = vmatmul.bf16.gmra.mxu0 %v1072
      %v1086 = vpop.f32.mrf.mxu0
      %v1087 = vadd.f32 0.0, %v1086
      %v1088 = vpop.f32.mrf.mxu0
      %1089 = vdwg.mxu0
      %v1090 = vunpack.c.l.b16 %v406
      %v1091 = vpack.c.b16 %v1090, %v1090
      %1092 = vrot.lane.b32.xlu0 %v1091, 64
      %v1093 = vpop.permute.xlu0 %1092
      %v1095 = vsel %vm449, %v406, 0
      %v1098 = vsel %vm449, %v1093, 0
      %1100 = vmatpush.bf16.xpose.msra.mxu0 0
      %1101 = vmatpush.bf16.xpose.msra.mxu0 0
      %1102 = vmatpush.bf16.xpose.msra.mxu0 0
      %1103 = vmatpush.bf16.xpose.msra.mxu0 0
      %1104 = vmatpush.bf16.xpose.msra.mxu0 0
      %1105 = vmatpush.bf16.xpose.msra.mxu0 0
      %1106 = vmatpush.bf16.xpose.msra.mxu0 0
      %1107 = vmatpush.bf16.xpose.msra.mxu0 %v1098
      %1108 = vmatmul.bf16.gmra.mxu0 %v1095
      %v1109 = vpop.f32.mrf.mxu0
      %v1110 = vadd.f32 0.0, %v1109
      %v1111 = vpop.f32.mrf.mxu0
      %1112 = vdwg.mxu0
      %v1113 = vunpack.c.l.b16 %v408
      %v1114 = vpack.c.b16 %v1113, %v1113
      %1115 = vrot.lane.b32.xlu0 %v1114, 64
      %v1116 = vpop.permute.xlu0 %1115
      %v1118 = vsel %vm449, %v408, 0
      %v1121 = vsel %vm449, %v1116, 0
      %1123 = vmatpush.bf16.xpose.msra.mxu0 0
      %1124 = vmatpush.bf16.xpose.msra.mxu0 0
      %1125 = vmatpush.bf16.xpose.msra.mxu0 0
      %1126 = vmatpush.bf16.xpose.msra.mxu0 0
      %1127 = vmatpush.bf16.xpose.msra.mxu0 0
      %1128 = vmatpush.bf16.xpose.msra.mxu0 0
      %1129 = vmatpush.bf16.xpose.msra.mxu0 0
      %1130 = vmatpush.bf16.xpose.msra.mxu0 %v1121
      %1131 = vmatmul.bf16.gmra.mxu0 %v1118
      %v1132 = vpop.f32.mrf.mxu0
      %v1133 = vadd.f32 0.0, %v1132
      %v1134 = vpop.f32.mrf.mxu0
      %1135 = vdwg.mxu0
      %v1136 = vunpack.c.l.b16 %v410
      %v1137 = vpack.c.b16 %v1136, %v1136
      %1138 = vrot.lane.b32.xlu0 %v1137, 64
      %v1139 = vpop.permute.xlu0 %1138
      %v1141 = vsel %vm449, %v410, 0
      %v1144 = vsel %vm449, %v1139, 0
      %1146 = vmatpush.bf16.xpose.msra.mxu0 0
      %1147 = vmatpush.bf16.xpose.msra.mxu0 0
      %1148 = vmatpush.bf16.xpose.msra.mxu0 0
      %1149 = vmatpush.bf16.xpose.msra.mxu0 0
      %1150 = vmatpush.bf16.xpose.msra.mxu0 0
      %1151 = vmatpush.bf16.xpose.msra.mxu0 0
      %1152 = vmatpush.bf16.xpose.msra.mxu0 0
      %1153 = vmatpush.bf16.xpose.msra.mxu0 %v1144
      %1154 = vmatmul.bf16.gmra.mxu0 %v1141
      %v1155 = vpop.f32.mrf.mxu0
      %v1156 = vadd.f32 0.0, %v1155
      %v1157 = vpop.f32.mrf.mxu0
      %1158 = vdwg.mxu0
      %v1159 = vunpack.c.l.b16 %v412
      %v1160 = vpack.c.b16 %v1159, %v1159
      %1161 = vrot.lane.b32.xlu0 %v1160, 64
      %v1162 = vpop.permute.xlu0 %1161
      %v1164 = vsel %vm449, %v412, 0
      %v1167 = vsel %vm449, %v1162, 0
      %1169 = vmatpush.bf16.xpose.msra.mxu0 0
      %1170 = vmatpush.bf16.xpose.msra.mxu0 0
      %1171 = vmatpush.bf16.xpose.msra.mxu0 0
      %1172 = vmatpush.bf16.xpose.msra.mxu0 0
      %1173 = vmatpush.bf16.xpose.msra.mxu0 0
      %1174 = vmatpush.bf16.xpose.msra.mxu0 0
      %1175 = vmatpush.bf16.xpose.msra.mxu0 0
      %1176 = vmatpush.bf16.xpose.msra.mxu0 %v1167
      %1177 = vmatmul.bf16.gmra.mxu0 %v1164
      %v1178 = vpop.f32.mrf.mxu0
      %v1179 = vadd.f32 0.0, %v1178
      %v1180 = vpop.f32.mrf.mxu0
      %1181 = vdwg.mxu0
      %v1182 = vmul.f32 %v466, 0.5
      %v1183 = vmul.f32 %v489, 0.5
      %v1184 = vmul.f32 %v512, 0.5
      %v1185 = vmul.f32 %v535, 0.5
      %v1186 = vmul.f32 %v558, 0.5
      %v1187 = vmul.f32 %v581, 0.5
      %v1188 = vmul.f32 %v604, 0.5
      %v1189 = vmul.f32 %v627, 0.5
      %v1190 = vmul.f32 %v650, 0.5
      %v1191 = vmul.f32 %v673, 0.5
      %v1192 = vmul.f32 %v696, 0.5
      %v1193 = vmul.f32 %v719, 0.5
      %v1194 = vmul.f32 %v742, 0.5
      %v1195 = vmul.f32 %v765, 0.5
      %v1196 = vmul.f32 %v788, 0.5
      %v1197 = vmul.f32 %v811, 0.5
      %v1198 = vmul.f32 %v834, 0.5
      %v1199 = vmul.f32 %v857, 0.5
      %v1200 = vmul.f32 %v880, 0.5
      %v1201 = vmul.f32 %v903, 0.5
      %v1202 = vmul.f32 %v926, 0.5
      %v1203 = vmul.f32 %v949, 0.5
      %v1204 = vmul.f32 %v972, 0.5
      %v1205 = vmul.f32 %v995, 0.5
      %v1206 = vmul.f32 %v1018, 0.5
      %v1207 = vmul.f32 %v1041, 0.5
      %v1208 = vmul.f32 %v1064, 0.5
      %v1209 = vmul.f32 %v1087, 0.5
      %v1210 = vmul.f32 %v1110, 0.5
      %v1211 = vmul.f32 %v1133, 0.5
      %v1212 = vmul.f32 %v1156, 0.5
      %v1213 = vmul.f32 %v1179, 0.5
      %v1214 = vlaneseq
      %v1215 = vshrl.u32 %v1214, 7
      %v1216 = vlaneseq
      %v1217 = vand.u32 %v1216, 127
      %vm1218 = vcmp.ge.s32.totalorder %v1215, %v1217
      %v1219 = vsel %vm1218, 1, 0
      %vm1220 = vcmp.eq.s32.totalorder %v1219, 1
      %v1221 = vsel %vm1220, %v1182, -1e+30
      %v1222 = vsel %vm1220, %v1183, -1e+30
      %v1223 = vsel %vm1220, %v1184, -1e+30
      %v1224 = vsel %vm1220, %v1185, -1e+30
      %v1225 = vsel %vm1220, %v1186, -1e+30
      %v1226 = vsel %vm1220, %v1187, -1e+30
      %v1227 = vsel %vm1220, %v1188, -1e+30
      %v1228 = vsel %vm1220, %v1189, -1e+30
      %v1229 = vsel %vm1220, %v1190, -1e+30
      %v1230 = vsel %vm1220, %v1191, -1e+30
      %v1231 = vsel %vm1220, %v1192, -1e+30
      %v1232 = vsel %vm1220, %v1193, -1e+30
      %v1233 = vsel %vm1220, %v1194, -1e+30
      %v1234 = vsel %vm1220, %v1195, -1e+30
      %v1235 = vsel %vm1220, %v1196, -1e+30
      %v1236 = vsel %vm1220, %v1197, -1e+30
      %v1237 = vsel %vm1220, %v1198, -1e+30
      %v1238 = vsel %vm1220, %v1199, -1e+30
      %v1239 = vsel %vm1220, %v1200, -1e+30
      %v1240 = vsel %vm1220, %v1201, -1e+30
      %v1241 = vsel %vm1220, %v1202, -1e+30
      %v1242 = vsel %vm1220, %v1203, -1e+30
      %v1243 = vsel %vm1220, %v1204, -1e+30
      %v1244 = vsel %vm1220, %v1205, -1e+30
      %v1245 = vsel %vm1220, %v1206, -1e+30
      %v1246 = vsel %vm1220, %v1207, -1e+30
      %v1247 = vsel %vm1220, %v1208, -1e+30
      %v1248 = vsel %vm1220, %v1209, -1e+30
      %v1249 = vsel %vm1220, %v1210, -1e+30
      %v1250 = vsel %vm1220, %v1211, -1e+30
      %v1251 = vsel %vm1220, %v1212, -1e+30
      %v1252 = vsel %vm1220, %v1213, -1e+30
      %vm1253 = vcmask 64512
      %v1254 = vsel %vm1253, %v1221, -inf
      %1255 = vmax.xlane.f32.xlu0 %v1254
      %v1256 = vpop.xlane.xlu0 %1255
      %v1257 = vsel %vm1253, %v1222, -inf
      %1258 = vmax.xlane.f32.xlu0 %v1257
      %v1259 = vpop.xlane.xlu0 %1258
      %v1260 = vsel %vm1253, %v1223, -inf
      %1261 = vmax.xlane.f32.xlu0 %v1260
      %v1262 = vpop.xlane.xlu0 %1261
      %v1263 = vsel %vm1253, %v1224, -inf
      %1264 = vmax.xlane.f32.xlu0 %v1263
      %v1265 = vpop.xlane.xlu0 %1264
      %v1266 = vsel %vm1253, %v1225, -inf
      %1267 = vmax.xlane.f32.xlu0 %v1266
      %v1268 = vpop.xlane.xlu0 %1267
      %v1269 = vsel %vm1253, %v1226, -inf
      %1270 = vmax.xlane.f32.xlu0 %v1269
      %v1271 = vpop.xlane.xlu0 %1270
      %v1272 = vsel %vm1253, %v1227, -inf
      %1273 = vmax.xlane.f32.xlu0 %v1272
      %v1274 = vpop.xlane.xlu0 %1273
      %v1275 = vsel %vm1253, %v1228, -inf
      %1276 = vmax.xlane.f32.xlu0 %v1275
      %v1277 = vpop.xlane.xlu0 %1276
      %v1278 = vsel %vm1253, %v1229, -inf
      %1279 = vmax.xlane.f32.xlu0 %v1278
      %v1280 = vpop.xlane.xlu0 %1279
      %v1281 = vsel %vm1253, %v1230, -inf
      %1282 = vmax.xlane.f32.xlu0 %v1281
      %v1283 = vpop.xlane.xlu0 %1282
      %v1284 = vsel %vm1253, %v1231, -inf
      %1285 = vmax.xlane.f32.xlu0 %v1284
      %v1286 = vpop.xlane.xlu0 %1285
      %v1287 = vsel %vm1253, %v1232, -inf
      %1288 = vmax.xlane.f32.xlu0 %v1287
      %v1289 = vpop.xlane.xlu0 %1288
      %v1290 = vsel %vm1253, %v1233, -inf
      %1291 = vmax.xlane.f32.xlu0 %v1290
      %v1292 = vpop.xlane.xlu0 %1291
      %v1293 = vsel %vm1253, %v1234, -inf
      %1294 = vmax.xlane.f32.xlu0 %v1293
      %v1295 = vpop.xlane.xlu0 %1294
      %v1296 = vsel %vm1253, %v1235, -inf
      %1297 = vmax.xlane.f32.xlu0 %v1296
      %v1298 = vpop.xlane.xlu0 %1297
      %v1299 = vsel %vm1253, %v1236, -inf
      %1300 = vmax.xlane.f32.xlu0 %v1299
      %v1301 = vpop.xlane.xlu0 %1300
      %v1302 = vsel %vm1253, %v1237, -inf
      %1303 = vmax.xlane.f32.xlu0 %v1302
      %v1304 = vpop.xlane.xlu0 %1303
      %v1305 = vsel %vm1253, %v1238, -inf
      %1306 = vmax.xlane.f32.xlu0 %v1305
      %v1307 = vpop.xlane.xlu0 %1306
      %v1308 = vsel %vm1253, %v1239, -inf
      %1309 = vmax.xlane.f32.xlu0 %v1308
      %v1310 = vpop.xlane.xlu0 %1309
      %v1311 = vsel %vm1253, %v1240, -inf
      %1312 = vmax.xlane.f32.xlu0 %v1311
      %v1313 = vpop.xlane.xlu0 %1312
      %v1314 = vsel %vm1253, %v1241, -inf
      %1315 = vmax.xlane.f32.xlu0 %v1314
      %v1316 = vpop.xlane.xlu0 %1315
      %v1317 = vsel %vm1253, %v1242, -inf
      %1318 = vmax.xlane.f32.xlu0 %v1317
      %v1319 = vpop.xlane.xlu0 %1318
      %v1320 = vsel %vm1253, %v1243, -inf
      %1321 = vmax.xlane.f32.xlu0 %v1320
      %v1322 = vpop.xlane.xlu0 %1321
      %v1323 = vsel %vm1253, %v1244, -inf
      %1324 = vmax.xlane.f32.xlu0 %v1323
      %v1325 = vpop.xlane.xlu0 %1324
      %v1326 = vsel %vm1253, %v1245, -inf
      %1327 = vmax.xlane.f32.xlu0 %v1326
      %v1328 = vpop.xlane.xlu0 %1327
      %v1329 = vsel %vm1253, %v1246, -inf
      %1330 = vmax.xlane.f32.xlu0 %v1329
      %v1331 = vpop.xlane.xlu0 %1330
      %v1332 = vsel %vm1253, %v1247, -inf
      %1333 = vmax.xlane.f32.xlu0 %v1332
      %v1334 = vpop.xlane.xlu0 %1333
      %v1335 = vsel %vm1253, %v1248, -inf
      %1336 = vmax.xlane.f32.xlu0 %v1335
      %v1337 = vpop.xlane.xlu0 %1336
      %v1338 = vsel %vm1253, %v1249, -inf
      %1339 = vmax.xlane.f32.xlu0 %v1338
      %v1340 = vpop.xlane.xlu0 %1339
      %v1341 = vsel %vm1253, %v1250, -inf
      %1342 = vmax.xlane.f32.xlu0 %v1341
      %v1343 = vpop.xlane.xlu0 %1342
      %v1344 = vsel %vm1253, %v1251, -inf
      %1345 = vmax.xlane.f32.xlu0 %v1344
      %v1346 = vpop.xlane.xlu0 %1345
      %v1347 = vsel %vm1253, %v1252, -inf
      %1348 = vmax.xlane.f32.xlu0 %v1347
      %v1349 = vpop.xlane.xlu0 %1348
      %v1350 = vsub.f32 %v1221, %v1256
      %v1351 = vsub.f32 %v1222, %v1259
      %v1352 = vsub.f32 %v1223, %v1262
      %v1353 = vsub.f32 %v1224, %v1265
      %v1354 = vsub.f32 %v1225, %v1268
      %v1355 = vsub.f32 %v1226, %v1271
      %v1356 = vsub.f32 %v1227, %v1274
      %v1357 = vsub.f32 %v1228, %v1277
      %v1358 = vsub.f32 %v1229, %v1280
      %v1359 = vsub.f32 %v1230, %v1283
      %v1360 = vsub.f32 %v1231, %v1286
      %v1361 = vsub.f32 %v1232, %v1289
      %v1362 = vsub.f32 %v1233, %v1292
      %v1363 = vsub.f32 %v1234, %v1295
      %v1364 = vsub.f32 %v1235, %v1298
      %v1365 = vsub.f32 %v1236, %v1301
      %v1366 = vsub.f32 %v1237, %v1304
      %v1367 = vsub.f32 %v1238, %v1307
      %v1368 = vsub.f32 %v1239, %v1310
      %v1369 = vsub.f32 %v1240, %v1313
      %v1370 = vsub.f32 %v1241, %v1316
      %v1371 = vsub.f32 %v1242, %v1319
      %v1372 = vsub.f32 %v1243, %v1322
      %v1373 = vsub.f32 %v1244, %v1325
      %v1374 = vsub.f32 %v1245, %v1328
      %v1375 = vsub.f32 %v1246, %v1331
      %v1376 = vsub.f32 %v1247, %v1334
      %v1377 = vsub.f32 %v1248, %v1337
      %v1378 = vsub.f32 %v1249, %v1340
      %v1379 = vsub.f32 %v1250, %v1343
      %v1380 = vsub.f32 %v1251, %v1346
      %v1381 = vsub.f32 %v1252, %v1349
      %v1382 = vmul.f32 %v1350, 1.442695
      %v1383 = vpow.pop %v1382
      %v1384 = vmul.f32 %v1351, 1.442695
      %v1385 = vpow.pop %v1384
      %v1386 = vmul.f32 %v1352, 1.442695
      %v1387 = vpow.pop %v1386
      %v1388 = vmul.f32 %v1353, 1.442695
      %v1389 = vpow.pop %v1388
      %v1390 = vmul.f32 %v1354, 1.442695
      %v1391 = vpow.pop %v1390
      %v1392 = vmul.f32 %v1355, 1.442695
      %v1393 = vpow.pop %v1392
      %v1394 = vmul.f32 %v1356, 1.442695
      %v1395 = vpow.pop %v1394
      %v1396 = vmul.f32 %v1357, 1.442695
      %v1397 = vpow.pop %v1396
      %v1398 = vmul.f32 %v1358, 1.442695
      %v1399 = vpow.pop %v1398
      %v1400 = vmul.f32 %v1359, 1.442695
      %v1401 = vpow.pop %v1400
      %v1402 = vmul.f32 %v1360, 1.442695
      %v1403 = vpow.pop %v1402
      %v1404 = vmul.f32 %v1361, 1.442695
      %v1405 = vpow.pop %v1404
      %v1406 = vmul.f32 %v1362, 1.442695
      %v1407 = vpow.pop %v1406
      %v1408 = vmul.f32 %v1363, 1.442695
      %v1409 = vpow.pop %v1408
      %v1410 = vmul.f32 %v1364, 1.442695
      %v1411 = vpow.pop %v1410
      %v1412 = vmul.f32 %v1365, 1.442695
      %v1413 = vpow.pop %v1412
      %v1414 = vmul.f32 %v1366, 1.442695
      %v1415 = vpow.pop %v1414
      %v1416 = vmul.f32 %v1367, 1.442695
      %v1417 = vpow.pop %v1416
      %v1418 = vmul.f32 %v1368, 1.442695
      %v1419 = vpow.pop %v1418
      %v1420 = vmul.f32 %v1369, 1.442695
      %v1421 = vpow.pop %v1420
      %v1422 = vmul.f32 %v1370, 1.442695
      %v1423 = vpow.pop %v1422
      %v1424 = vmul.f32 %v1371, 1.442695
      %v1425 = vpow.pop %v1424
      %v1426 = vmul.f32 %v1372, 1.442695
      %v1427 = vpow.pop %v1426
      %v1428 = vmul.f32 %v1373, 1.442695
      %v1429 = vpow.pop %v1428
      %v1430 = vmul.f32 %v1374, 1.442695
      %v1431 = vpow.pop %v1430
      %v1432 = vmul.f32 %v1375, 1.442695
      %v1433 = vpow.pop %v1432
      %v1434 = vmul.f32 %v1376, 1.442695
      %v1435 = vpow.pop %v1434
      %v1436 = vmul.f32 %v1377, 1.442695
      %v1437 = vpow.pop %v1436
      %v1438 = vmul.f32 %v1378, 1.442695
      %v1439 = vpow.pop %v1438
      %v1440 = vmul.f32 %v1379, 1.442695
      %v1441 = vpow.pop %v1440
      %v1442 = vmul.f32 %v1380, 1.442695
      %v1443 = vpow.pop %v1442
      %v1444 = vmul.f32 %v1381, 1.442695
      %v1445 = vpow.pop %v1444
      %v1446 = vsel %vm1253, %v1383, 0.0
      %1447 = vadd.xlane.f32.xlu0 %v1446
      %v1448 = vpop.xlane.xlu0 %1447
      %v1449 = vsel %vm1253, %v1385, 0.0
      %1450 = vadd.xlane.f32.xlu0 %v1449
      %v1451 = vpop.xlane.xlu0 %1450
      %v1452 = vsel %vm1253, %v1387, 0.0
      %1453 = vadd.xlane.f32.xlu0 %v1452
      %v1454 = vpop.xlane.xlu0 %1453
      %v1455 = vsel %vm1253, %v1389, 0.0
      %1456 = vadd.xlane.f32.xlu0 %v1455
      %v1457 = vpop.xlane.xlu0 %1456
      %v1458 = vsel %vm1253, %v1391, 0.0
      %1459 = vadd.xlane.f32.xlu0 %v1458
      %v1460 = vpop.xlane.xlu0 %1459
      %v1461 = vsel %vm1253, %v1393, 0.0
      %1462 = vadd.xlane.f32.xlu0 %v1461
      %v1463 = vpop.xlane.xlu0 %1462
      %v1464 = vsel %vm1253, %v1395, 0.0
      %1465 = vadd.xlane.f32.xlu0 %v1464
      %v1466 = vpop.xlane.xlu0 %1465
      %v1467 = vsel %vm1253, %v1397, 0.0
      %1468 = vadd.xlane.f32.xlu0 %v1467
      %v1469 = vpop.xlane.xlu0 %1468
      %v1470 = vsel %vm1253, %v1399, 0.0
      %1471 = vadd.xlane.f32.xlu0 %v1470
      %v1472 = vpop.xlane.xlu0 %1471
      %v1473 = vsel %vm1253, %v1401, 0.0
      %1474 = vadd.xlane.f32.xlu0 %v1473
      %v1475 = vpop.xlane.xlu0 %1474
      %v1476 = vsel %vm1253, %v1403, 0.0
      %1477 = vadd.xlane.f32.xlu0 %v1476
      %v1478 = vpop.xlane.xlu0 %1477
      %v1479 = vsel %vm1253, %v1405, 0.0
      %1480 = vadd.xlane.f32.xlu0 %v1479
      %v1481 = vpop.xlane.xlu0 %1480
      %v1482 = vsel %vm1253, %v1407, 0.0
      %1483 = vadd.xlane.f32.xlu0 %v1482
      %v1484 = vpop.xlane.xlu0 %1483
      %v1485 = vsel %vm1253, %v1409, 0.0
      %1486 = vadd.xlane.f32.xlu0 %v1485
      %v1487 = vpop.xlane.xlu0 %1486
      %v1488 = vsel %vm1253, %v1411, 0.0
      %1489 = vadd.xlane.f32.xlu0 %v1488
      %v1490 = vpop.xlane.xlu0 %1489
      %v1491 = vsel %vm1253, %v1413, 0.0
      %1492 = vadd.xlane.f32.xlu0 %v1491
      %v1493 = vpop.xlane.xlu0 %1492
      %v1494 = vsel %vm1253, %v1415, 0.0
      %1495 = vadd.xlane.f32.xlu0 %v1494
      %v1496 = vpop.xlane.xlu0 %1495
      %v1497 = vsel %vm1253, %v1417, 0.0
      %1498 = vadd.xlane.f32.xlu0 %v1497
      %v1499 = vpop.xlane.xlu0 %1498
      %v1500 = vsel %vm1253, %v1419, 0.0
      %1501 = vadd.xlane.f32.xlu0 %v1500
      %v1502 = vpop.xlane.xlu0 %1501
      %v1503 = vsel %vm1253, %v1421, 0.0
      %1504 = vadd.xlane.f32.xlu0 %v1503
      %v1505 = vpop.xlane.xlu0 %1504
      %v1506 = vsel %vm1253, %v1423, 0.0
      %1507 = vadd.xlane.f32.xlu0 %v1506
      %v1508 = vpop.xlane.xlu0 %1507
      %v1509 = vsel %vm1253, %v1425, 0.0
      %1510 = vadd.xlane.f32.xlu0 %v1509
      %v1511 = vpop.xlane.xlu0 %1510
      %v1512 = vsel %vm1253, %v1427, 0.0
      %1513 = vadd.xlane.f32.xlu0 %v1512
      %v1514 = vpop.xlane.xlu0 %1513
      %v1515 = vsel %vm1253, %v1429, 0.0
      %1516 = vadd.xlane.f32.xlu0 %v1515
      %v1517 = vpop.xlane.xlu0 %1516
      %v1518 = vsel %vm1253, %v1431, 0.0
      %1519 = vadd.xlane.f32.xlu0 %v1518
      %v1520 = vpop.xlane.xlu0 %1519
      %v1521 = vsel %vm1253, %v1433, 0.0
      %1522 = vadd.xlane.f32.xlu0 %v1521
      %v1523 = vpop.xlane.xlu0 %1522
      %v1524 = vsel %vm1253, %v1435, 0.0
      %1525 = vadd.xlane.f32.xlu0 %v1524
      %v1526 = vpop.xlane.xlu0 %1525
      %v1527 = vsel %vm1253, %v1437, 0.0
      %1528 = vadd.xlane.f32.xlu0 %v1527
      %v1529 = vpop.xlane.xlu0 %1528
      %v1530 = vsel %vm1253, %v1439, 0.0
      %1531 = vadd.xlane.f32.xlu0 %v1530
      %v1532 = vpop.xlane.xlu0 %1531
      %v1533 = vsel %vm1253, %v1441, 0.0
      %1534 = vadd.xlane.f32.xlu0 %v1533
      %v1535 = vpop.xlane.xlu0 %1534
      %v1536 = vsel %vm1253, %v1443, 0.0
      %1537 = vadd.xlane.f32.xlu0 %v1536
      %v1538 = vpop.xlane.xlu0 %1537
      %v1539 = vsel %vm1253, %v1445, 0.0
      %1540 = vadd.xlane.f32.xlu0 %v1539
      %v1541 = vpop.xlane.xlu0 %1540
      %v1542 = vrcp.pop %v1448
      %v1543 = vmul.f32 %v1448, %v1542
      %v1544 = vsub.f32 1.0, %v1543
      %v1545 = vmul.f32 %v1542, %v1544
      %v1546 = vadd.f32 %v1542, %v1545
      %vm1547 = vweird.f32 %v1448
      %vm1548 = vweird.f32 %v1542
      %vm1549 = vmor %vm1547, %vm1548
      %v1550 = vsel %vm1549, %v1542, %v1546
      %v1551 = vand.u32 2147483647, %v1448
      %vm1552 = vcmp.eq.f32.partialorder %v1551, 8.507059e+37
      %v1553 = vand.u32 %v1448, 2147483648
      %v1554 = vor.u32 1.1754944e-38, %v1553
      %v1555 = vsel %vm1552, %v1554, %v1550
      %v1556 = vmul.f32 %v1383, %v1555
      %v1557 = vrcp.pop %v1451
      %v1558 = vmul.f32 %v1451, %v1557
      %v1559 = vsub.f32 1.0, %v1558
      %v1560 = vmul.f32 %v1557, %v1559
      %v1561 = vadd.f32 %v1557, %v1560
      %vm1562 = vweird.f32 %v1451
      %vm1563 = vweird.f32 %v1557
      %vm1564 = vmor %vm1562, %vm1563
      %v1565 = vsel %vm1564, %v1557, %v1561
      %v1566 = vand.u32 2147483647, %v1451
      %vm1567 = vcmp.eq.f32.partialorder %v1566, 8.507059e+37
      %v1568 = vand.u32 %v1451, 2147483648
      %v1569 = vor.u32 1.1754944e-38, %v1568
      %v1570 = vsel %vm1567, %v1569, %v1565
      %v1571 = vmul.f32 %v1385, %v1570
      %v1572 = vrcp.pop %v1454
      %v1573 = vmul.f32 %v1454, %v1572
      %v1574 = vsub.f32 1.0, %v1573
      %v1575 = vmul.f32 %v1572, %v1574
      %v1576 = vadd.f32 %v1572, %v1575
      %vm1577 = vweird.f32 %v1454
      %vm1578 = vweird.f32 %v1572
      %vm1579 = vmor %vm1577, %vm1578
      %v1580 = vsel %vm1579, %v1572, %v1576
      %v1581 = vand.u32 2147483647, %v1454
      %vm1582 = vcmp.eq.f32.partialorder %v1581, 8.507059e+37
      %v1583 = vand.u32 %v1454, 2147483648
      %v1584 = vor.u32 1.1754944e-38, %v1583
      %v1585 = vsel %vm1582, %v1584, %v1580
      %v1586 = vmul.f32 %v1387, %v1585
      %v1587 = vrcp.pop %v1457
      %v1588 = vmul.f32 %v1457, %v1587
      %v1589 = vsub.f32 1.0, %v1588
      %v1590 = vmul.f32 %v1587, %v1589
      %v1591 = vadd.f32 %v1587, %v1590
      %vm1592 = vweird.f32 %v1457
      %vm1593 = vweird.f32 %v1587
      %vm1594 = vmor %vm1592, %vm1593
      %v1595 = vsel %vm1594, %v1587, %v1591
      %v1596 = vand.u32 2147483647, %v1457
      %vm1597 = vcmp.eq.f32.partialorder %v1596, 8.507059e+37
      %v1598 = vand.u32 %v1457, 2147483648
      %v1599 = vor.u32 1.1754944e-38, %v1598
      %v1600 = vsel %vm1597, %v1599, %v1595
      %v1601 = vmul.f32 %v1389, %v1600
      %v1602 = vrcp.pop %v1460
      %v1603 = vmul.f32 %v1460, %v1602
      %v1604 = vsub.f32 1.0, %v1603
      %v1605 = vmul.f32 %v1602, %v1604
      %v1606 = vadd.f32 %v1602, %v1605
      %vm1607 = vweird.f32 %v1460
      %vm1608 = vweird.f32 %v1602
      %vm1609 = vmor %vm1607, %vm1608
      %v1610 = vsel %vm1609, %v1602, %v1606
      %v1611 = vand.u32 2147483647, %v1460
      %vm1612 = vcmp.eq.f32.partialorder %v1611, 8.507059e+37
      %v1613 = vand.u32 %v1460, 2147483648
      %v1614 = vor.u32 1.1754944e-38, %v1613
      %v1615 = vsel %vm1612, %v1614, %v1610
      %v1616 = vmul.f32 %v1391, %v1615
      %v1617 = vrcp.pop %v1463
      %v1618 = vmul.f32 %v1463, %v1617
      %v1619 = vsub.f32 1.0, %v1618
      %v1620 = vmul.f32 %v1617, %v1619
      %v1621 = vadd.f32 %v1617, %v1620
      %vm1622 = vweird.f32 %v1463
      %vm1623 = vweird.f32 %v1617
      %vm1624 = vmor %vm1622, %vm1623
      %v1625 = vsel %vm1624, %v1617, %v1621
      %v1626 = vand.u32 2147483647, %v1463
      %vm1627 = vcmp.eq.f32.partialorder %v1626, 8.507059e+37
      %v1628 = vand.u32 %v1463, 2147483648
      %v1629 = vor.u32 1.1754944e-38, %v1628
      %v1630 = vsel %vm1627, %v1629, %v1625
      %v1631 = vmul.f32 %v1393, %v1630
      %v1632 = vrcp.pop %v1466
      %v1633 = vmul.f32 %v1466, %v1632
      %v1634 = vsub.f32 1.0, %v1633
      %v1635 = vmul.f32 %v1632, %v1634
      %v1636 = vadd.f32 %v1632, %v1635
      %vm1637 = vweird.f32 %v1466
      %vm1638 = vweird.f32 %v1632
      %vm1639 = vmor %vm1637, %vm1638
      %v1640 = vsel %vm1639, %v1632, %v1636
      %v1641 = vand.u32 2147483647, %v1466
      %vm1642 = vcmp.eq.f32.partialorder %v1641, 8.507059e+37
      %v1643 = vand.u32 %v1466, 2147483648
      %v1644 = vor.u32 1.1754944e-38, %v1643
      %v1645 = vsel %vm1642, %v1644, %v1640
      %v1646 = vmul.f32 %v1395, %v1645
      %v1647 = vrcp.pop %v1469
      %v1648 = vmul.f32 %v1469, %v1647
      %v1649 = vsub.f32 1.0, %v1648
      %v1650 = vmul.f32 %v1647, %v1649
      %v1651 = vadd.f32 %v1647, %v1650
      %vm1652 = vweird.f32 %v1469
      %vm1653 = vweird.f32 %v1647
      %vm1654 = vmor %vm1652, %vm1653
      %v1655 = vsel %vm1654, %v1647, %v1651
      %v1656 = vand.u32 2147483647, %v1469
      %vm1657 = vcmp.eq.f32.partialorder %v1656, 8.507059e+37
      %v1658 = vand.u32 %v1469, 2147483648
      %v1659 = vor.u32 1.1754944e-38, %v1658
      %v1660 = vsel %vm1657, %v1659, %v1655
      %v1661 = vmul.f32 %v1397, %v1660
      %v1662 = vrcp.pop %v1472
      %v1663 = vmul.f32 %v1472, %v1662
      %v1664 = vsub.f32 1.0, %v1663
      %v1665 = vmul.f32 %v1662, %v1664
      %v1666 = vadd.f32 %v1662, %v1665
      %vm1667 = vweird.f32 %v1472
      %vm1668 = vweird.f32 %v1662
      %vm1669 = vmor %vm1667, %vm1668
      %v1670 = vsel %vm1669, %v1662, %v1666
      %v1671 = vand.u32 2147483647, %v1472
      %vm1672 = vcmp.eq.f32.partialorder %v1671, 8.507059e+37
      %v1673 = vand.u32 %v1472, 2147483648
      %v1674 = vor.u32 1.1754944e-38, %v1673
      %v1675 = vsel %vm1672, %v1674, %v1670
      %v1676 = vmul.f32 %v1399, %v1675
      %v1677 = vrcp.pop %v1475
      %v1678 = vmul.f32 %v1475, %v1677
      %v1679 = vsub.f32 1.0, %v1678
      %v1680 = vmul.f32 %v1677, %v1679
      %v1681 = vadd.f32 %v1677, %v1680
      %vm1682 = vweird.f32 %v1475
      %vm1683 = vweird.f32 %v1677
      %vm1684 = vmor %vm1682, %vm1683
      %v1685 = vsel %vm1684, %v1677, %v1681
      %v1686 = vand.u32 2147483647, %v1475
      %vm1687 = vcmp.eq.f32.partialorder %v1686, 8.507059e+37
      %v1688 = vand.u32 %v1475, 2147483648
      %v1689 = vor.u32 1.1754944e-38, %v1688
      %v1690 = vsel %vm1687, %v1689, %v1685
      %v1691 = vmul.f32 %v1401, %v1690
      %v1692 = vrcp.pop %v1478
      %v1693 = vmul.f32 %v1478, %v1692
      %v1694 = vsub.f32 1.0, %v1693
      %v1695 = vmul.f32 %v1692, %v1694
      %v1696 = vadd.f32 %v1692, %v1695
      %vm1697 = vweird.f32 %v1478
      %vm1698 = vweird.f32 %v1692
      %vm1699 = vmor %vm1697, %vm1698
      %v1700 = vsel %vm1699, %v1692, %v1696
      %v1701 = vand.u32 2147483647, %v1478
      %vm1702 = vcmp.eq.f32.partialorder %v1701, 8.507059e+37
      %v1703 = vand.u32 %v1478, 2147483648
      %v1704 = vor.u32 1.1754944e-38, %v1703
      %v1705 = vsel %vm1702, %v1704, %v1700
      %v1706 = vmul.f32 %v1403, %v1705
      %v1707 = vrcp.pop %v1481
      %v1708 = vmul.f32 %v1481, %v1707
      %v1709 = vsub.f32 1.0, %v1708
      %v1710 = vmul.f32 %v1707, %v1709
      %v1711 = vadd.f32 %v1707, %v1710
      %vm1712 = vweird.f32 %v1481
      %vm1713 = vweird.f32 %v1707
      %vm1714 = vmor %vm1712, %vm1713
      %v1715 = vsel %vm1714, %v1707, %v1711
      %v1716 = vand.u32 2147483647, %v1481
      %vm1717 = vcmp.eq.f32.partialorder %v1716, 8.507059e+37
      %v1718 = vand.u32 %v1481, 2147483648
      %v1719 = vor.u32 1.1754944e-38, %v1718
      %v1720 = vsel %vm1717, %v1719, %v1715
      %v1721 = vmul.f32 %v1405, %v1720
      %v1722 = vrcp.pop %v1484
      %v1723 = vmul.f32 %v1484, %v1722
      %v1724 = vsub.f32 1.0, %v1723
      %v1725 = vmul.f32 %v1722, %v1724
      %v1726 = vadd.f32 %v1722, %v1725
      %vm1727 = vweird.f32 %v1484
      %vm1728 = vweird.f32 %v1722
      %vm1729 = vmor %vm1727, %vm1728
      %v1730 = vsel %vm1729, %v1722, %v1726
      %v1731 = vand.u32 2147483647, %v1484
      %vm1732 = vcmp.eq.f32.partialorder %v1731, 8.507059e+37
      %v1733 = vand.u32 %v1484, 2147483648
      %v1734 = vor.u32 1.1754944e-38, %v1733
      %v1735 = vsel %vm1732, %v1734, %v1730
      %v1736 = vmul.f32 %v1407, %v1735
      %v1737 = vrcp.pop %v1487
      %v1738 = vmul.f32 %v1487, %v1737
      %v1739 = vsub.f32 1.0, %v1738
      %v1740 = vmul.f32 %v1737, %v1739
      %v1741 = vadd.f32 %v1737, %v1740
      %vm1742 = vweird.f32 %v1487
      %vm1743 = vweird.f32 %v1737
      %vm1744 = vmor %vm1742, %vm1743
      %v1745 = vsel %vm1744, %v1737, %v1741
      %v1746 = vand.u32 2147483647, %v1487
      %vm1747 = vcmp.eq.f32.partialorder %v1746, 8.507059e+37
      %v1748 = vand.u32 %v1487, 2147483648
      %v1749 = vor.u32 1.1754944e-38, %v1748
      %v1750 = vsel %vm1747, %v1749, %v1745
      %v1751 = vmul.f32 %v1409, %v1750
      %v1752 = vrcp.pop %v1490
      %v1753 = vmul.f32 %v1490, %v1752
      %v1754 = vsub.f32 1.0, %v1753
      %v1755 = vmul.f32 %v1752, %v1754
      %v1756 = vadd.f32 %v1752, %v1755
      %vm1757 = vweird.f32 %v1490
      %vm1758 = vweird.f32 %v1752
      %vm1759 = vmor %vm1757, %vm1758
      %v1760 = vsel %vm1759, %v1752, %v1756
      %v1761 = vand.u32 2147483647, %v1490
      %vm1762 = vcmp.eq.f32.partialorder %v1761, 8.507059e+37
      %v1763 = vand.u32 %v1490, 2147483648
      %v1764 = vor.u32 1.1754944e-38, %v1763
      %v1765 = vsel %vm1762, %v1764, %v1760
      %v1766 = vmul.f32 %v1411, %v1765
      %v1767 = vrcp.pop %v1493
      %v1768 = vmul.f32 %v1493, %v1767
      %v1769 = vsub.f32 1.0, %v1768
      %v1770 = vmul.f32 %v1767, %v1769
      %v1771 = vadd.f32 %v1767, %v1770
      %vm1772 = vweird.f32 %v1493
      %vm1773 = vweird.f32 %v1767
      %vm1774 = vmor %vm1772, %vm1773
      %v1775 = vsel %vm1774, %v1767, %v1771
      %v1776 = vand.u32 2147483647, %v1493
      %vm1777 = vcmp.eq.f32.partialorder %v1776, 8.507059e+37
      %v1778 = vand.u32 %v1493, 2147483648
      %v1779 = vor.u32 1.1754944e-38, %v1778
      %v1780 = vsel %vm1777, %v1779, %v1775
      %v1781 = vmul.f32 %v1413, %v1780
      %v1782 = vrcp.pop %v1496
      %v1783 = vmul.f32 %v1496, %v1782
      %v1784 = vsub.f32 1.0, %v1783
      %v1785 = vmul.f32 %v1782, %v1784
      %v1786 = vadd.f32 %v1782, %v1785
      %vm1787 = vweird.f32 %v1496
      %vm1788 = vweird.f32 %v1782
      %vm1789 = vmor %vm1787, %vm1788
      %v1790 = vsel %vm1789, %v1782, %v1786
      %v1791 = vand.u32 2147483647, %v1496
      %vm1792 = vcmp.eq.f32.partialorder %v1791, 8.507059e+37
      %v1793 = vand.u32 %v1496, 2147483648
      %v1794 = vor.u32 1.1754944e-38, %v1793
      %v1795 = vsel %vm1792, %v1794, %v1790
      %v1796 = vmul.f32 %v1415, %v1795
      %v1797 = vrcp.pop %v1499
      %v1798 = vmul.f32 %v1499, %v1797
      %v1799 = vsub.f32 1.0, %v1798
      %v1800 = vmul.f32 %v1797, %v1799
      %v1801 = vadd.f32 %v1797, %v1800
      %vm1802 = vweird.f32 %v1499
      %vm1803 = vweird.f32 %v1797
      %vm1804 = vmor %vm1802, %vm1803
      %v1805 = vsel %vm1804, %v1797, %v1801
      %v1806 = vand.u32 2147483647, %v1499
      %vm1807 = vcmp.eq.f32.partialorder %v1806, 8.507059e+37
      %v1808 = vand.u32 %v1499, 2147483648
      %v1809 = vor.u32 1.1754944e-38, %v1808
      %v1810 = vsel %vm1807, %v1809, %v1805
      %v1811 = vmul.f32 %v1417, %v1810
      %v1812 = vrcp.pop %v1502
      %v1813 = vmul.f32 %v1502, %v1812
      %v1814 = vsub.f32 1.0, %v1813
      %v1815 = vmul.f32 %v1812, %v1814
      %v1816 = vadd.f32 %v1812, %v1815
      %vm1817 = vweird.f32 %v1502
      %vm1818 = vweird.f32 %v1812
      %vm1819 = vmor %vm1817, %vm1818
      %v1820 = vsel %vm1819, %v1812, %v1816
      %v1821 = vand.u32 2147483647, %v1502
      %vm1822 = vcmp.eq.f32.partialorder %v1821, 8.507059e+37
      %v1823 = vand.u32 %v1502, 2147483648
      %v1824 = vor.u32 1.1754944e-38, %v1823
      %v1825 = vsel %vm1822, %v1824, %v1820
      %v1826 = vmul.f32 %v1419, %v1825
      %v1827 = vrcp.pop %v1505
      %v1828 = vmul.f32 %v1505, %v1827
      %v1829 = vsub.f32 1.0, %v1828
      %v1830 = vmul.f32 %v1827, %v1829
      %v1831 = vadd.f32 %v1827, %v1830
      %vm1832 = vweird.f32 %v1505
      %vm1833 = vweird.f32 %v1827
      %vm1834 = vmor %vm1832, %vm1833
      %v1835 = vsel %vm1834, %v1827, %v1831
      %v1836 = vand.u32 2147483647, %v1505
      %vm1837 = vcmp.eq.f32.partialorder %v1836, 8.507059e+37
      %v1838 = vand.u32 %v1505, 2147483648
      %v1839 = vor.u32 1.1754944e-38, %v1838
      %v1840 = vsel %vm1837, %v1839, %v1835
      %v1841 = vmul.f32 %v1421, %v1840
      %v1842 = vrcp.pop %v1508
      %v1843 = vmul.f32 %v1508, %v1842
      %v1844 = vsub.f32 1.0, %v1843
      %v1845 = vmul.f32 %v1842, %v1844
      %v1846 = vadd.f32 %v1842, %v1845
      %vm1847 = vweird.f32 %v1508
      %vm1848 = vweird.f32 %v1842
      %vm1849 = vmor %vm1847, %vm1848
      %v1850 = vsel %vm1849, %v1842, %v1846
      %v1851 = vand.u32 2147483647, %v1508
      %vm1852 = vcmp.eq.f32.partialorder %v1851, 8.507059e+37
      %v1853 = vand.u32 %v1508, 2147483648
      %v1854 = vor.u32 1.1754944e-38, %v1853
      %v1855 = vsel %vm1852, %v1854, %v1850
      %v1856 = vmul.f32 %v1423, %v1855
      %v1857 = vrcp.pop %v1511
      %v1858 = vmul.f32 %v1511, %v1857
      %v1859 = vsub.f32 1.0, %v1858
      %v1860 = vmul.f32 %v1857, %v1859
      %v1861 = vadd.f32 %v1857, %v1860
      %vm1862 = vweird.f32 %v1511
      %vm1863 = vweird.f32 %v1857
      %vm1864 = vmor %vm1862, %vm1863
      %v1865 = vsel %vm1864, %v1857, %v1861
      %v1866 = vand.u32 2147483647, %v1511
      %vm1867 = vcmp.eq.f32.partialorder %v1866, 8.507059e+37
      %v1868 = vand.u32 %v1511, 2147483648
      %v1869 = vor.u32 1.1754944e-38, %v1868
      %v1870 = vsel %vm1867, %v1869, %v1865
      %v1871 = vmul.f32 %v1425, %v1870
      %v1872 = vrcp.pop %v1514
      %v1873 = vmul.f32 %v1514, %v1872
      %v1874 = vsub.f32 1.0, %v1873
      %v1875 = vmul.f32 %v1872, %v1874
      %v1876 = vadd.f32 %v1872, %v1875
      %vm1877 = vweird.f32 %v1514
      %vm1878 = vweird.f32 %v1872
      %vm1879 = vmor %vm1877, %vm1878
      %v1880 = vsel %vm1879, %v1872, %v1876
      %v1881 = vand.u32 2147483647, %v1514
      %vm1882 = vcmp.eq.f32.partialorder %v1881, 8.507059e+37
      %v1883 = vand.u32 %v1514, 2147483648
      %v1884 = vor.u32 1.1754944e-38, %v1883
      %v1885 = vsel %vm1882, %v1884, %v1880
      %v1886 = vmul.f32 %v1427, %v1885
      %v1887 = vrcp.pop %v1517
      %v1888 = vmul.f32 %v1517, %v1887
      %v1889 = vsub.f32 1.0, %v1888
      %v1890 = vmul.f32 %v1887, %v1889
      %v1891 = vadd.f32 %v1887, %v1890
      %vm1892 = vweird.f32 %v1517
      %vm1893 = vweird.f32 %v1887
      %vm1894 = vmor %vm1892, %vm1893
      %v1895 = vsel %vm1894, %v1887, %v1891
      %v1896 = vand.u32 2147483647, %v1517
      %vm1897 = vcmp.eq.f32.partialorder %v1896, 8.507059e+37
      %v1898 = vand.u32 %v1517, 2147483648
      %v1899 = vor.u32 1.1754944e-38, %v1898
      %v1900 = vsel %vm1897, %v1899, %v1895
      %v1901 = vmul.f32 %v1429, %v1900
      %v1902 = vrcp.pop %v1520
      %v1903 = vmul.f32 %v1520, %v1902
      %v1904 = vsub.f32 1.0, %v1903
      %v1905 = vmul.f32 %v1902, %v1904
      %v1906 = vadd.f32 %v1902, %v1905
      %vm1907 = vweird.f32 %v1520
      %vm1908 = vweird.f32 %v1902
      %vm1909 = vmor %vm1907, %vm1908
      %v1910 = vsel %vm1909, %v1902, %v1906
      %v1911 = vand.u32 2147483647, %v1520
      %vm1912 = vcmp.eq.f32.partialorder %v1911, 8.507059e+37
      %v1913 = vand.u32 %v1520, 2147483648
      %v1914 = vor.u32 1.1754944e-38, %v1913
      %v1915 = vsel %vm1912, %v1914, %v1910
      %v1916 = vmul.f32 %v1431, %v1915
      %v1917 = vrcp.pop %v1523
      %v1918 = vmul.f32 %v1523, %v1917
      %v1919 = vsub.f32 1.0, %v1918
      %v1920 = vmul.f32 %v1917, %v1919
      %v1921 = vadd.f32 %v1917, %v1920
      %vm1922 = vweird.f32 %v1523
      %vm1923 = vweird.f32 %v1917
      %vm1924 = vmor %vm1922, %vm1923
      %v1925 = vsel %vm1924, %v1917, %v1921
      %v1926 = vand.u32 2147483647, %v1523
      %vm1927 = vcmp.eq.f32.partialorder %v1926, 8.507059e+37
      %v1928 = vand.u32 %v1523, 2147483648
      %v1929 = vor.u32 1.1754944e-38, %v1928
      %v1930 = vsel %vm1927, %v1929, %v1925
      %v1931 = vmul.f32 %v1433, %v1930
      %v1932 = vrcp.pop %v1526
      %v1933 = vmul.f32 %v1526, %v1932
      %v1934 = vsub.f32 1.0, %v1933
      %v1935 = vmul.f32 %v1932, %v1934
      %v1936 = vadd.f32 %v1932, %v1935
      %vm1937 = vweird.f32 %v1526
      %vm1938 = vweird.f32 %v1932
      %vm1939 = vmor %vm1937, %vm1938
      %v1940 = vsel %vm1939, %v1932, %v1936
      %v1941 = vand.u32 2147483647, %v1526
      %vm1942 = vcmp.eq.f32.partialorder %v1941, 8.507059e+37
      %v1943 = vand.u32 %v1526, 2147483648
      %v1944 = vor.u32 1.1754944e-38, %v1943
      %v1945 = vsel %vm1942, %v1944, %v1940
      %v1946 = vmul.f32 %v1435, %v1945
      %v1947 = vrcp.pop %v1529
      %v1948 = vmul.f32 %v1529, %v1947
      %v1949 = vsub.f32 1.0, %v1948
      %v1950 = vmul.f32 %v1947, %v1949
      %v1951 = vadd.f32 %v1947, %v1950
      %vm1952 = vweird.f32 %v1529
      %vm1953 = vweird.f32 %v1947
      %vm1954 = vmor %vm1952, %vm1953
      %v1955 = vsel %vm1954, %v1947, %v1951
      %v1956 = vand.u32 2147483647, %v1529
      %vm1957 = vcmp.eq.f32.partialorder %v1956, 8.507059e+37
      %v1958 = vand.u32 %v1529, 2147483648
      %v1959 = vor.u32 1.1754944e-38, %v1958
      %v1960 = vsel %vm1957, %v1959, %v1955
      %v1961 = vmul.f32 %v1437, %v1960
      %v1962 = vrcp.pop %v1532
      %v1963 = vmul.f32 %v1532, %v1962
      %v1964 = vsub.f32 1.0, %v1963
      %v1965 = vmul.f32 %v1962, %v1964
      %v1966 = vadd.f32 %v1962, %v1965
      %vm1967 = vweird.f32 %v1532
      %vm1968 = vweird.f32 %v1962
      %vm1969 = vmor %vm1967, %vm1968
      %v1970 = vsel %vm1969, %v1962, %v1966
      %v1971 = vand.u32 2147483647, %v1532
      %vm1972 = vcmp.eq.f32.partialorder %v1971, 8.507059e+37
      %v1973 = vand.u32 %v1532, 2147483648
      %v1974 = vor.u32 1.1754944e-38, %v1973
      %v1975 = vsel %vm1972, %v1974, %v1970
      %v1976 = vmul.f32 %v1439, %v1975
      %v1977 = vrcp.pop %v1535
      %v1978 = vmul.f32 %v1535, %v1977
      %v1979 = vsub.f32 1.0, %v1978
      %v1980 = vmul.f32 %v1977, %v1979
      %v1981 = vadd.f32 %v1977, %v1980
      %vm1982 = vweird.f32 %v1535
      %vm1983 = vweird.f32 %v1977
      %vm1984 = vmor %vm1982, %vm1983
      %v1985 = vsel %vm1984, %v1977, %v1981
      %v1986 = vand.u32 2147483647, %v1535
      %vm1987 = vcmp.eq.f32.partialorder %v1986, 8.507059e+37
      %v1988 = vand.u32 %v1535, 2147483648
      %v1989 = vor.u32 1.1754944e-38, %v1988
      %v1990 = vsel %vm1987, %v1989, %v1985
      %v1991 = vmul.f32 %v1441, %v1990
      %v1992 = vrcp.pop %v1538
      %v1993 = vmul.f32 %v1538, %v1992
      %v1994 = vsub.f32 1.0, %v1993
      %v1995 = vmul.f32 %v1992, %v1994
      %v1996 = vadd.f32 %v1992, %v1995
      %vm1997 = vweird.f32 %v1538
      %vm1998 = vweird.f32 %v1992
      %vm1999 = vmor %vm1997, %vm1998
      %v2000 = vsel %vm1999, %v1992, %v1996
      %v2001 = vand.u32 2147483647, %v1538
      %vm2002 = vcmp.eq.f32.partialorder %v2001, 8.507059e+37
      %v2003 = vand.u32 %v1538, 2147483648
      %v2004 = vor.u32 1.1754944e-38, %v2003
      %v2005 = vsel %vm2002, %v2004, %v2000
      %v2006 = vmul.f32 %v1443, %v2005
      %v2007 = vrcp.pop %v1541
      %v2008 = vmul.f32 %v1541, %v2007
      %v2009 = vsub.f32 1.0, %v2008
      %v2010 = vmul.f32 %v2007, %v2009
      %v2011 = vadd.f32 %v2007, %v2010
      %vm2012 = vweird.f32 %v1541
      %vm2013 = vweird.f32 %v2007
      %vm2014 = vmor %vm2012, %vm2013
      %v2015 = vsel %vm2014, %v2007, %v2011
      %v2016 = vand.u32 2147483647, %v1541
      %vm2017 = vcmp.eq.f32.partialorder %v2016, 8.507059e+37
      %v2018 = vand.u32 %v1541, 2147483648
      %v2019 = vor.u32 1.1754944e-38, %v2018
      %v2020 = vsel %vm2017, %v2019, %v2015
      %v2021 = vmul.f32 %v1445, %v2020
      %v2022 = vpack.c.bf16 %v1556, %v1556
      %v2023 = vpack.c.bf16 %v1571, %v1571
      %v2024 = vpack.c.bf16 %v1586, %v1586
      %v2025 = vpack.c.bf16 %v1601, %v1601
      %v2026 = vpack.c.bf16 %v1616, %v1616
      %v2027 = vpack.c.bf16 %v1631, %v1631
      %v2028 = vpack.c.bf16 %v1646, %v1646
      %v2029 = vpack.c.bf16 %v1661, %v1661
      %v2030 = vpack.c.bf16 %v1676, %v1676
      %v2031 = vpack.c.bf16 %v1691, %v1691
      %v2032 = vpack.c.bf16 %v1706, %v1706
      %v2033 = vpack.c.bf16 %v1721, %v1721
      %v2034 = vpack.c.bf16 %v1736, %v1736
      %v2035 = vpack.c.bf16 %v1751, %v1751
      %v2036 = vpack.c.bf16 %v1766, %v1766
      %v2037 = vpack.c.bf16 %v1781, %v1781
      %v2038 = vpack.c.bf16 %v1796, %v1796
      %v2039 = vpack.c.bf16 %v1811, %v1811
      %v2040 = vpack.c.bf16 %v1826, %v1826
      %v2041 = vpack.c.bf16 %v1841, %v1841
      %v2042 = vpack.c.bf16 %v1856, %v1856
      %v2043 = vpack.c.bf16 %v1871, %v1871
      %v2044 = vpack.c.bf16 %v1886, %v1886
      %v2045 = vpack.c.bf16 %v1901, %v1901
      %v2046 = vpack.c.bf16 %v1916, %v1916
      %v2047 = vpack.c.bf16 %v1931, %v1931
      %v2048 = vpack.c.bf16 %v1946, %v1946
      %v2049 = vpack.c.bf16 %v1961, %v1961
      %v2050 = vpack.c.bf16 %v1976, %v1976
      %v2051 = vpack.c.bf16 %v1991, %v1991
      %v2052 = vpack.c.bf16 %v2006, %v2006
      %v2053 = vpack.c.bf16 %v2021, %v2021
      %v2055 = vsel %vm1253, %v2022, 0
      %vm2057 = vcmask 1043456
      %v2059 = vsel %vm2057, %v413, 0
      %2061 = vmatpush.bf16.msra.mxu0 0
      %2062 = vmatpush.bf16.msra.mxu0 0
      %2063 = vmatpush.bf16.msra.mxu0 0
      %2064 = vmatpush.bf16.msra.mxu0 0
      %2065 = vmatpush.bf16.msra.mxu0 0
      %2066 = vmatpush.bf16.msra.mxu0 0
      %2067 = vmatpush.bf16.msra.mxu0 0
      %2068 = vmatpush.bf16.msra.mxu0 %v2059
      %2069 = vmatmul.bf16.gmra.mxu0 %v2055
      %v2070 = vpop.f32.mrf.mxu0
      %v2071 = vadd.f32 0.0, %v2070
      %v2072 = vpop.f32.mrf.mxu0
      %2073 = vdwg.mxu0
      %v2075 = vsel %vm1253, %v2023, 0
      %v2078 = vsel %vm2057, %v414, 0
      %2080 = vmatpush.bf16.msra.mxu0 0
      %2081 = vmatpush.bf16.msra.mxu0 0
      %2082 = vmatpush.bf16.msra.mxu0 0
      %2083 = vmatpush.bf16.msra.mxu0 0
      %2084 = vmatpush.bf16.msra.mxu0 0
      %2085 = vmatpush.bf16.msra.mxu0 0
      %2086 = vmatpush.bf16.msra.mxu0 0
      %2087 = vmatpush.bf16.msra.mxu0 %v2078
      %2088 = vmatmul.bf16.gmra.mxu0 %v2075
      %v2089 = vpop.f32.mrf.mxu0
      %v2090 = vadd.f32 0.0, %v2089
      %v2091 = vpop.f32.mrf.mxu0
      %2092 = vdwg.mxu0
      %v2094 = vsel %vm1253, %v2024, 0
      %v2097 = vsel %vm2057, %v415, 0
      %2099 = vmatpush.bf16.msra.mxu0 0
      %2100 = vmatpush.bf16.msra.mxu0 0
      %2101 = vmatpush.bf16.msra.mxu0 0
      %2102 = vmatpush.bf16.msra.mxu0 0
      %2103 = vmatpush.bf16.msra.mxu0 0
      %2104 = vmatpush.bf16.msra.mxu0 0
      %2105 = vmatpush.bf16.msra.mxu0 0
      %2106 = vmatpush.bf16.msra.mxu0 %v2097
      %2107 = vmatmul.bf16.gmra.mxu0 %v2094
      %v2108 = vpop.f32.mrf.mxu0
      %v2109 = vadd.f32 0.0, %v2108
      %v2110 = vpop.f32.mrf.mxu0
      %2111 = vdwg.mxu0
      %v2113 = vsel %vm1253, %v2025, 0
      %v2116 = vsel %vm2057, %v416, 0
      %2118 = vmatpush.bf16.msra.mxu0 0
      %2119 = vmatpush.bf16.msra.mxu0 0
      %2120 = vmatpush.bf16.msra.mxu0 0
      %2121 = vmatpush.bf16.msra.mxu0 0
      %2122 = vmatpush.bf16.msra.mxu0 0
      %2123 = vmatpush.bf16.msra.mxu0 0
      %2124 = vmatpush.bf16.msra.mxu0 0
      %2125 = vmatpush.bf16.msra.mxu0 %v2116
      %2126 = vmatmul.bf16.gmra.mxu0 %v2113
      %v2127 = vpop.f32.mrf.mxu0
      %v2128 = vadd.f32 0.0, %v2127
      %v2129 = vpop.f32.mrf.mxu0
      %2130 = vdwg.mxu0
      %v2132 = vsel %vm1253, %v2026, 0
      %v2135 = vsel %vm2057, %v417, 0
      %2137 = vmatpush.bf16.msra.mxu0 0
      %2138 = vmatpush.bf16.msra.mxu0 0
      %2139 = vmatpush.bf16.msra.mxu0 0
      %2140 = vmatpush.bf16.msra.mxu0 0
      %2141 = vmatpush.bf16.msra.mxu0 0
      %2142 = vmatpush.bf16.msra.mxu0 0
      %2143 = vmatpush.bf16.msra.mxu0 0
      %2144 = vmatpush.bf16.msra.mxu0 %v2135
      %2145 = vmatmul.bf16.gmra.mxu0 %v2132
      %v2146 = vpop.f32.mrf.mxu0
      %v2147 = vadd.f32 0.0, %v2146
      %v2148 = vpop.f32.mrf.mxu0
      %2149 = vdwg.mxu0
      %v2151 = vsel %vm1253, %v2027, 0
      %v2154 = vsel %vm2057, %v418, 0
      %2156 = vmatpush.bf16.msra.mxu0 0
      %2157 = vmatpush.bf16.msra.mxu0 0
      %2158 = vmatpush.bf16.msra.mxu0 0
      %2159 = vmatpush.bf16.msra.mxu0 0
      %2160 = vmatpush.bf16.msra.mxu0 0
      %2161 = vmatpush.bf16.msra.mxu0 0
      %2162 = vmatpush.bf16.msra.mxu0 0
      %2163 = vmatpush.bf16.msra.mxu0 %v2154
      %2164 = vmatmul.bf16.gmra.mxu0 %v2151
      %v2165 = vpop.f32.mrf.mxu0
      %v2166 = vadd.f32 0.0, %v2165
      %v2167 = vpop.f32.mrf.mxu0
      %2168 = vdwg.mxu0
      %v2170 = vsel %vm1253, %v2028, 0
      %v2173 = vsel %vm2057, %v419, 0
      %2175 = vmatpush.bf16.msra.mxu0 0
      %2176 = vmatpush.bf16.msra.mxu0 0
      %2177 = vmatpush.bf16.msra.mxu0 0
      %2178 = vmatpush.bf16.msra.mxu0 0
      %2179 = vmatpush.bf16.msra.mxu0 0
      %2180 = vmatpush.bf16.msra.mxu0 0
      %2181 = vmatpush.bf16.msra.mxu0 0
      %2182 = vmatpush.bf16.msra.mxu0 %v2173
      %2183 = vmatmul.bf16.gmra.mxu0 %v2170
      %v2184 = vpop.f32.mrf.mxu0
      %v2185 = vadd.f32 0.0, %v2184
      %v2186 = vpop.f32.mrf.mxu0
      %2187 = vdwg.mxu0
      %v2189 = vsel %vm1253, %v2029, 0
      %v2192 = vsel %vm2057, %v420, 0
      %2194 = vmatpush.bf16.msra.mxu0 0
      %2195 = vmatpush.bf16.msra.mxu0 0
      %2196 = vmatpush.bf16.msra.mxu0 0
      %2197 = vmatpush.bf16.msra.mxu0 0
      %2198 = vmatpush.bf16.msra.mxu0 0
      %2199 = vmatpush.bf16.msra.mxu0 0
      %2200 = vmatpush.bf16.msra.mxu0 0
      %2201 = vmatpush.bf16.msra.mxu0 %v2192
      %2202 = vmatmul.bf16.gmra.mxu0 %v2189
      %v2203 = vpop.f32.mrf.mxu0
      %v2204 = vadd.f32 0.0, %v2203
      %v2205 = vpop.f32.mrf.mxu0
      %2206 = vdwg.mxu0
      %v2208 = vsel %vm1253, %v2030, 0
      %v2211 = vsel %vm2057, %v421, 0
      %2213 = vmatpush.bf16.msra.mxu0 0
      %2214 = vmatpush.bf16.msra.mxu0 0
      %2215 = vmatpush.bf16.msra.mxu0 0
      %2216 = vmatpush.bf16.msra.mxu0 0
      %2217 = vmatpush.bf16.msra.mxu0 0
      %2218 = vmatpush.bf16.msra.mxu0 0
      %2219 = vmatpush.bf16.msra.mxu0 0
      %2220 = vmatpush.bf16.msra.mxu0 %v2211
      %2221 = vmatmul.bf16.gmra.mxu0 %v2208
      %v2222 = vpop.f32.mrf.mxu0
      %v2223 = vadd.f32 0.0, %v2222
      %v2224 = vpop.f32.mrf.mxu0
      %2225 = vdwg.mxu0
      %v2227 = vsel %vm1253, %v2031, 0
      %v2230 = vsel %vm2057, %v422, 0
      %2232 = vmatpush.bf16.msra.mxu0 0
      %2233 = vmatpush.bf16.msra.mxu0 0
      %2234 = vmatpush.bf16.msra.mxu0 0
      %2235 = vmatpush.bf16.msra.mxu0 0
      %2236 = vmatpush.bf16.msra.mxu0 0
      %2237 = vmatpush.bf16.msra.mxu0 0
      %2238 = vmatpush.bf16.msra.mxu0 0
      %2239 = vmatpush.bf16.msra.mxu0 %v2230
      %2240 = vmatmul.bf16.gmra.mxu0 %v2227
      %v2241 = vpop.f32.mrf.mxu0
      %v2242 = vadd.f32 0.0, %v2241
      %v2243 = vpop.f32.mrf.mxu0
      %2244 = vdwg.mxu0
      %v2246 = vsel %vm1253, %v2032, 0
      %v2249 = vsel %vm2057, %v423, 0
      %2251 = vmatpush.bf16.msra.mxu0 0
      %2252 = vmatpush.bf16.msra.mxu0 0
      %2253 = vmatpush.bf16.msra.mxu0 0
      %2254 = vmatpush.bf16.msra.mxu0 0
      %2255 = vmatpush.bf16.msra.mxu0 0
      %2256 = vmatpush.bf16.msra.mxu0 0
      %2257 = vmatpush.bf16.msra.mxu0 0
      %2258 = vmatpush.bf16.msra.mxu0 %v2249
      %2259 = vmatmul.bf16.gmra.mxu0 %v2246
      %v2260 = vpop.f32.mrf.mxu0
      %v2261 = vadd.f32 0.0, %v2260
      %v2262 = vpop.f32.mrf.mxu0
      %2263 = vdwg.mxu0
      %v2265 = vsel %vm1253, %v2033, 0
      %v2268 = vsel %vm2057, %v424, 0
      %2270 = vmatpush.bf16.msra.mxu0 0
      %2271 = vmatpush.bf16.msra.mxu0 0
      %2272 = vmatpush.bf16.msra.mxu0 0
      %2273 = vmatpush.bf16.msra.mxu0 0
      %2274 = vmatpush.bf16.msra.mxu0 0
      %2275 = vmatpush.bf16.msra.mxu0 0
      %2276 = vmatpush.bf16.msra.mxu0 0
      %2277 = vmatpush.bf16.msra.mxu0 %v2268
      %2278 = vmatmul.bf16.gmra.mxu0 %v2265
      %v2279 = vpop.f32.mrf.mxu0
      %v2280 = vadd.f32 0.0, %v2279
      %v2281 = vpop.f32.mrf.mxu0
      %2282 = vdwg.mxu0
      %v2284 = vsel %vm1253, %v2034, 0
      %v2287 = vsel %vm2057, %v425, 0
      %2289 = vmatpush.bf16.msra.mxu0 0
      %2290 = vmatpush.bf16.msra.mxu0 0
      %2291 = vmatpush.bf16.msra.mxu0 0
      %2292 = vmatpush.bf16.msra.mxu0 0
      %2293 = vmatpush.bf16.msra.mxu0 0
      %2294 = vmatpush.bf16.msra.mxu0 0
      %2295 = vmatpush.bf16.msra.mxu0 0
      %2296 = vmatpush.bf16.msra.mxu0 %v2287
      %2297 = vmatmul.bf16.gmra.mxu0 %v2284
      %v2298 = vpop.f32.mrf.mxu0
      %v2299 = vadd.f32 0.0, %v2298
      %v2300 = vpop.f32.mrf.mxu0
      %2301 = vdwg.mxu0
      %v2303 = vsel %vm1253, %v2035, 0
      %v2306 = vsel %vm2057, %v426, 0
      %2308 = vmatpush.bf16.msra.mxu0 0
      %2309 = vmatpush.bf16.msra.mxu0 0
      %2310 = vmatpush.bf16.msra.mxu0 0
      %2311 = vmatpush.bf16.msra.mxu0 0
      %2312 = vmatpush.bf16.msra.mxu0 0
      %2313 = vmatpush.bf16.msra.mxu0 0
      %2314 = vmatpush.bf16.msra.mxu0 0
      %2315 = vmatpush.bf16.msra.mxu0 %v2306
      %2316 = vmatmul.bf16.gmra.mxu0 %v2303
      %v2317 = vpop.f32.mrf.mxu0
      %v2318 = vadd.f32 0.0, %v2317
      %v2319 = vpop.f32.mrf.mxu0
      %2320 = vdwg.mxu0
      %v2322 = vsel %vm1253, %v2036, 0
      %v2325 = vsel %vm2057, %v427, 0
      %2327 = vmatpush.bf16.msra.mxu0 0
      %2328 = vmatpush.bf16.msra.mxu0 0
      %2329 = vmatpush.bf16.msra.mxu0 0
      %2330 = vmatpush.bf16.msra.mxu0 0
      %2331 = vmatpush.bf16.msra.mxu0 0
      %2332 = vmatpush.bf16.msra.mxu0 0
      %2333 = vmatpush.bf16.msra.mxu0 0
      %2334 = vmatpush.bf16.msra.mxu0 %v2325
      %2335 = vmatmul.bf16.gmra.mxu0 %v2322
      %v2336 = vpop.f32.mrf.mxu0
      %v2337 = vadd.f32 0.0, %v2336
      %v2338 = vpop.f32.mrf.mxu0
      %2339 = vdwg.mxu0
      %v2341 = vsel %vm1253, %v2037, 0
      %v2344 = vsel %vm2057, %v428, 0
      %2346 = vmatpush.bf16.msra.mxu0 0
      %2347 = vmatpush.bf16.msra.mxu0 0
      %2348 = vmatpush.bf16.msra.mxu0 0
      %2349 = vmatpush.bf16.msra.mxu0 0
      %2350 = vmatpush.bf16.msra.mxu0 0
      %2351 = vmatpush.bf16.msra.mxu0 0
      %2352 = vmatpush.bf16.msra.mxu0 0
      %2353 = vmatpush.bf16.msra.mxu0 %v2344
      %2354 = vmatmul.bf16.gmra.mxu0 %v2341
      %v2355 = vpop.f32.mrf.mxu0
      %v2356 = vadd.f32 0.0, %v2355
      %v2357 = vpop.f32.mrf.mxu0
      %2358 = vdwg.mxu0
      %v2360 = vsel %vm1253, %v2038, 0
      %v2363 = vsel %vm2057, %v429, 0
      %2365 = vmatpush.bf16.msra.mxu0 0
      %2366 = vmatpush.bf16.msra.mxu0 0
      %2367 = vmatpush.bf16.msra.mxu0 0
      %2368 = vmatpush.bf16.msra.mxu0 0
      %2369 = vmatpush.bf16.msra.mxu0 0
      %2370 = vmatpush.bf16.msra.mxu0 0
      %2371 = vmatpush.bf16.msra.mxu0 0
      %2372 = vmatpush.bf16.msra.mxu0 %v2363
      %2373 = vmatmul.bf16.gmra.mxu0 %v2360
      %v2374 = vpop.f32.mrf.mxu0
      %v2375 = vadd.f32 0.0, %v2374
      %v2376 = vpop.f32.mrf.mxu0
      %2377 = vdwg.mxu0
      %v2379 = vsel %vm1253, %v2039, 0
      %v2382 = vsel %vm2057, %v430, 0
      %2384 = vmatpush.bf16.msra.mxu0 0
      %2385 = vmatpush.bf16.msra.mxu0 0
      %2386 = vmatpush.bf16.msra.mxu0 0
      %2387 = vmatpush.bf16.msra.mxu0 0
      %2388 = vmatpush.bf16.msra.mxu0 0
      %2389 = vmatpush.bf16.msra.mxu0 0
      %2390 = vmatpush.bf16.msra.mxu0 0
      %2391 = vmatpush.bf16.msra.mxu0 %v2382
      %2392 = vmatmul.bf16.gmra.mxu0 %v2379
      %v2393 = vpop.f32.mrf.mxu0
      %v2394 = vadd.f32 0.0, %v2393
      %v2395 = vpop.f32.mrf.mxu0
      %2396 = vdwg.mxu0
      %v2398 = vsel %vm1253, %v2040, 0
      %v2401 = vsel %vm2057, %v431, 0
      %2403 = vmatpush.bf16.msra.mxu0 0
      %2404 = vmatpush.bf16.msra.mxu0 0
      %2405 = vmatpush.bf16.msra.mxu0 0
      %2406 = vmatpush.bf16.msra.mxu0 0
      %2407 = vmatpush.bf16.msra.mxu0 0
      %2408 = vmatpush.bf16.msra.mxu0 0
      %2409 = vmatpush.bf16.msra.mxu0 0
      %2410 = vmatpush.bf16.msra.mxu0 %v2401
      %2411 = vmatmul.bf16.gmra.mxu0 %v2398
      %v2412 = vpop.f32.mrf.mxu0
      %v2413 = vadd.f32 0.0, %v2412
      %v2414 = vpop.f32.mrf.mxu0
      %2415 = vdwg.mxu0
      %v2417 = vsel %vm1253, %v2041, 0
      %v2420 = vsel %vm2057, %v432, 0
      %2422 = vmatpush.bf16.msra.mxu0 0
      %2423 = vmatpush.bf16.msra.mxu0 0
      %2424 = vmatpush.bf16.msra.mxu0 0
      %2425 = vmatpush.bf16.msra.mxu0 0
      %2426 = vmatpush.bf16.msra.mxu0 0
      %2427 = vmatpush.bf16.msra.mxu0 0
      %2428 = vmatpush.bf16.msra.mxu0 0
      %2429 = vmatpush.bf16.msra.mxu0 %v2420
      %2430 = vmatmul.bf16.gmra.mxu0 %v2417
      %v2431 = vpop.f32.mrf.mxu0
      %v2432 = vadd.f32 0.0, %v2431
      %v2433 = vpop.f32.mrf.mxu0
      %2434 = vdwg.mxu0
      %v2436 = vsel %vm1253, %v2042, 0
      %v2439 = vsel %vm2057, %v433, 0
      %2441 = vmatpush.bf16.msra.mxu0 0
      %2442 = vmatpush.bf16.msra.mxu0 0
      %2443 = vmatpush.bf16.msra.mxu0 0
      %2444 = vmatpush.bf16.msra.mxu0 0
      %2445 = vmatpush.bf16.msra.mxu0 0
      %2446 = vmatpush.bf16.msra.mxu0 0
      %2447 = vmatpush.bf16.msra.mxu0 0
      %2448 = vmatpush.bf16.msra.mxu0 %v2439
      %2449 = vmatmul.bf16.gmra.mxu0 %v2436
      %v2450 = vpop.f32.mrf.mxu0
      %v2451 = vadd.f32 0.0, %v2450
      %v2452 = vpop.f32.mrf.mxu0
      %2453 = vdwg.mxu0
      %v2455 = vsel %vm1253, %v2043, 0
      %v2458 = vsel %vm2057, %v434, 0
      %2460 = vmatpush.bf16.msra.mxu0 0
      %2461 = vmatpush.bf16.msra.mxu0 0
      %2462 = vmatpush.bf16.msra.mxu0 0
      %2463 = vmatpush.bf16.msra.mxu0 0
      %2464 = vmatpush.bf16.msra.mxu0 0
      %2465 = vmatpush.bf16.msra.mxu0 0
      %2466 = vmatpush.bf16.msra.mxu0 0
      %2467 = vmatpush.bf16.msra.mxu0 %v2458
      %2468 = vmatmul.bf16.gmra.mxu0 %v2455
      %v2469 = vpop.f32.mrf.mxu0
      %v2470 = vadd.f32 0.0, %v2469
      %v2471 = vpop.f32.mrf.mxu0
      %2472 = vdwg.mxu0
      %v2474 = vsel %vm1253, %v2044, 0
      %v2477 = vsel %vm2057, %v435, 0
      %2479 = vmatpush.bf16.msra.mxu0 0
      %2480 = vmatpush.bf16.msra.mxu0 0
      %2481 = vmatpush.bf16.msra.mxu0 0
      %2482 = vmatpush.bf16.msra.mxu0 0
      %2483 = vmatpush.bf16.msra.mxu0 0
      %2484 = vmatpush.bf16.msra.mxu0 0
      %2485 = vmatpush.bf16.msra.mxu0 0
      %2486 = vmatpush.bf16.msra.mxu0 %v2477
      %2487 = vmatmul.bf16.gmra.mxu0 %v2474
      %v2488 = vpop.f32.mrf.mxu0
      %v2489 = vadd.f32 0.0, %v2488
      %v2490 = vpop.f32.mrf.mxu0
      %2491 = vdwg.mxu0
      %v2493 = vsel %vm1253, %v2045, 0
      %v2496 = vsel %vm2057, %v436, 0
      %2498 = vmatpush.bf16.msra.mxu0 0
      %2499 = vmatpush.bf16.msra.mxu0 0
      %2500 = vmatpush.bf16.msra.mxu0 0
      %2501 = vmatpush.bf16.msra.mxu0 0
      %2502 = vmatpush.bf16.msra.mxu0 0
      %2503 = vmatpush.bf16.msra.mxu0 0
      %2504 = vmatpush.bf16.msra.mxu0 0
      %2505 = vmatpush.bf16.msra.mxu0 %v2496
      %2506 = vmatmul.bf16.gmra.mxu0 %v2493
      %v2507 = vpop.f32.mrf.mxu0
      %v2508 = vadd.f32 0.0, %v2507
      %v2509 = vpop.f32.mrf.mxu0
      %2510 = vdwg.mxu0
      %v2512 = vsel %vm1253, %v2046, 0
      %v2515 = vsel %vm2057, %v437, 0
      %2517 = vmatpush.bf16.msra.mxu0 0
      %2518 = vmatpush.bf16.msra.mxu0 0
      %2519 = vmatpush.bf16.msra.mxu0 0
      %2520 = vmatpush.bf16.msra.mxu0 0
      %2521 = vmatpush.bf16.msra.mxu0 0
      %2522 = vmatpush.bf16.msra.mxu0 0
      %2523 = vmatpush.bf16.msra.mxu0 0
      %2524 = vmatpush.bf16.msra.mxu0 %v2515
      %2525 = vmatmul.bf16.gmra.mxu0 %v2512
      %v2526 = vpop.f32.mrf.mxu0
      %v2527 = vadd.f32 0.0, %v2526
      %v2528 = vpop.f32.mrf.mxu0
      %2529 = vdwg.mxu0
      %v2531 = vsel %vm1253, %v2047, 0
      %v2534 = vsel %vm2057, %v438, 0
      %2536 = vmatpush.bf16.msra.mxu0 0
      %2537 = vmatpush.bf16.msra.mxu0 0
      %2538 = vmatpush.bf16.msra.mxu0 0
      %2539 = vmatpush.bf16.msra.mxu0 0
      %2540 = vmatpush.bf16.msra.mxu0 0
      %2541 = vmatpush.bf16.msra.mxu0 0
      %2542 = vmatpush.bf16.msra.mxu0 0
      %2543 = vmatpush.bf16.msra.mxu0 %v2534
      %2544 = vmatmul.bf16.gmra.mxu0 %v2531
      %v2545 = vpop.f32.mrf.mxu0
      %v2546 = vadd.f32 0.0, %v2545
      %v2547 = vpop.f32.mrf.mxu0
      %2548 = vdwg.mxu0
      %v2550 = vsel %vm1253, %v2048, 0
      %v2553 = vsel %vm2057, %v439, 0
      %2555 = vmatpush.bf16.msra.mxu0 0
      %2556 = vmatpush.bf16.msra.mxu0 0
      %2557 = vmatpush.bf16.msra.mxu0 0
      %2558 = vmatpush.bf16.msra.mxu0 0
      %2559 = vmatpush.bf16.msra.mxu0 0
      %2560 = vmatpush.bf16.msra.mxu0 0
      %2561 = vmatpush.bf16.msra.mxu0 0
      %2562 = vmatpush.bf16.msra.mxu0 %v2553
      %2563 = vmatmul.bf16.gmra.mxu0 %v2550
      %v2564 = vpop.f32.mrf.mxu0
      %v2565 = vadd.f32 0.0, %v2564
      %v2566 = vpop.f32.mrf.mxu0
      %2567 = vdwg.mxu0
      %v2569 = vsel %vm1253, %v2049, 0
      %v2572 = vsel %vm2057, %v440, 0
      %2574 = vmatpush.bf16.msra.mxu0 0
      %2575 = vmatpush.bf16.msra.mxu0 0
      %2576 = vmatpush.bf16.msra.mxu0 0
      %2577 = vmatpush.bf16.msra.mxu0 0
      %2578 = vmatpush.bf16.msra.mxu0 0
      %2579 = vmatpush.bf16.msra.mxu0 0
      %2580 = vmatpush.bf16.msra.mxu0 0
      %2581 = vmatpush.bf16.msra.mxu0 %v2572
      %2582 = vmatmul.bf16.gmra.mxu0 %v2569
      %v2583 = vpop.f32.mrf.mxu0
      %v2584 = vadd.f32 0.0, %v2583
      %v2585 = vpop.f32.mrf.mxu0
      %2586 = vdwg.mxu0
      %v2588 = vsel %vm1253, %v2050, 0
      %v2591 = vsel %vm2057, %v441, 0
      %2593 = vmatpush.bf16.msra.mxu0 0
      %2594 = vmatpush.bf16.msra.mxu0 0
      %2595 = vmatpush.bf16.msra.mxu0 0
      %2596 = vmatpush.bf16.msra.mxu0 0
      %2597 = vmatpush.bf16.msra.mxu0 0
      %2598 = vmatpush.bf16.msra.mxu0 0
      %2599 = vmatpush.bf16.msra.mxu0 0
      %2600 = vmatpush.bf16.msra.mxu0 %v2591
      %2601 = vmatmul.bf16.gmra.mxu0 %v2588
      %v2602 = vpop.f32.mrf.mxu0
      %v2603 = vadd.f32 0.0, %v2602
      %v2604 = vpop.f32.mrf.mxu0
      %2605 = vdwg.mxu0
      %v2607 = vsel %vm1253, %v2051, 0
      %v2610 = vsel %vm2057, %v442, 0
      %2612 = vmatpush.bf16.msra.mxu0 0
      %2613 = vmatpush.bf16.msra.mxu0 0
      %2614 = vmatpush.bf16.msra.mxu0 0
      %2615 = vmatpush.bf16.msra.mxu0 0
      %2616 = vmatpush.bf16.msra.mxu0 0
      %2617 = vmatpush.bf16.msra.mxu0 0
      %2618 = vmatpush.bf16.msra.mxu0 0
      %2619 = vmatpush.bf16.msra.mxu0 %v2610
      %2620 = vmatmul.bf16.gmra.mxu0 %v2607
      %v2621 = vpop.f32.mrf.mxu0
      %v2622 = vadd.f32 0.0, %v2621
      %v2623 = vpop.f32.mrf.mxu0
      %2624 = vdwg.mxu0
      %v2626 = vsel %vm1253, %v2052, 0
      %v2629 = vsel %vm2057, %v443, 0
      %2631 = vmatpush.bf16.msra.mxu0 0
      %2632 = vmatpush.bf16.msra.mxu0 0
      %2633 = vmatpush.bf16.msra.mxu0 0
      %2634 = vmatpush.bf16.msra.mxu0 0
      %2635 = vmatpush.bf16.msra.mxu0 0
      %2636 = vmatpush.bf16.msra.mxu0 0
      %2637 = vmatpush.bf16.msra.mxu0 0
      %2638 = vmatpush.bf16.msra.mxu0 %v2629
      %2639 = vmatmul.bf16.gmra.mxu0 %v2626
      %v2640 = vpop.f32.mrf.mxu0
      %v2641 = vadd.f32 0.0, %v2640
      %v2642 = vpop.f32.mrf.mxu0
      %2643 = vdwg.mxu0
      %v2645 = vsel %vm1253, %v2053, 0
      %v2648 = vsel %vm2057, %v444, 0
      %2650 = vmatpush.bf16.msra.mxu0 0
      %2651 = vmatpush.bf16.msra.mxu0 0
      %2652 = vmatpush.bf16.msra.mxu0 0
      %2653 = vmatpush.bf16.msra.mxu0 0
      %2654 = vmatpush.bf16.msra.mxu0 0
      %2655 = vmatpush.bf16.msra.mxu0 0
      %2656 = vmatpush.bf16.msra.mxu0 0
      %2657 = vmatpush.bf16.msra.mxu0 %v2648
      %2658 = vmatmul.bf16.gmra.mxu0 %v2645
      %v2659 = vpop.f32.mrf.mxu0
      %v2660 = vadd.f32 0.0, %v2659
      %v2661 = vpop.f32.mrf.mxu0
      %2662 = vdwg.mxu0
      %2671 = vrot.lane.b32.xlu0 %v2223, 16
      %v2672 = vpop.permute.xlu0 %2671
      %2673 = vrot.lane.b32.xlu0 %v2242, 16
      %v2674 = vpop.permute.xlu0 %2673
      %2675 = vrot.lane.b32.xlu0 %v2261, 16
      %v2676 = vpop.permute.xlu0 %2675
      %2677 = vrot.lane.b32.xlu0 %v2280, 16
      %v2678 = vpop.permute.xlu0 %2677
      %2679 = vrot.lane.b32.xlu0 %v2299, 16
      %v2680 = vpop.permute.xlu0 %2679
      %2681 = vrot.lane.b32.xlu0 %v2318, 16
      %v2682 = vpop.permute.xlu0 %2681
      %2683 = vrot.lane.b32.xlu0 %v2337, 16
      %v2684 = vpop.permute.xlu0 %2683
      %2685 = vrot.lane.b32.xlu0 %v2356, 16
      %v2686 = vpop.permute.xlu0 %2685
      %2703 = vrot.lane.b32.xlu0 %v2375, 32
      %v2704 = vpop.permute.xlu0 %2703
      %2705 = vrot.lane.b32.xlu0 %v2394, 32
      %v2706 = vpop.permute.xlu0 %2705
      %2707 = vrot.lane.b32.xlu0 %v2413, 32
      %v2708 = vpop.permute.xlu0 %2707
      %2709 = vrot.lane.b32.xlu0 %v2432, 32
      %v2710 = vpop.permute.xlu0 %2709
      %2711 = vrot.lane.b32.xlu0 %v2451, 32
      %v2712 = vpop.permute.xlu0 %2711
      %2713 = vrot.lane.b32.xlu0 %v2470, 32
      %v2714 = vpop.permute.xlu0 %2713
      %2715 = vrot.lane.b32.xlu0 %v2489, 32
      %v2716 = vpop.permute.xlu0 %2715
      %2717 = vrot.lane.b32.xlu0 %v2508, 32
      %v2718 = vpop.permute.xlu0 %2717
      %2735 = vrot.lane.b32.xlu0 %v2527, 48
      %v2736 = vpop.permute.xlu0 %2735
      %2737 = vrot.lane.b32.xlu0 %v2546, 48
      %v2738 = vpop.permute.xlu0 %2737
      %2739 = vrot.lane.b32.xlu0 %v2565, 48
      %v2740 = vpop.permute.xlu0 %2739
      %2741 = vrot.lane.b32.xlu0 %v2584, 48
      %v2742 = vpop.permute.xlu0 %2741
      %2743 = vrot.lane.b32.xlu0 %v2603, 48
      %v2744 = vpop.permute.xlu0 %2743
      %2745 = vrot.lane.b32.xlu0 %v2622, 48
      %v2746 = vpop.permute.xlu0 %2745
      %2747 = vrot.lane.b32.xlu0 %v2641, 48
      %v2748 = vpop.permute.xlu0 %2747
      %2749 = vrot.lane.b32.xlu0 %v2660, 48
      %v2750 = vpop.permute.xlu0 %2749
      %v2759 = vsel %vm449, %v2071, %v2672
      %v2760 = vsel %vm449, %v2090, %v2674
      %v2761 = vsel %vm449, %v2109, %v2676
      %v2762 = vsel %vm449, %v2128, %v2678
      %v2763 = vsel %vm449, %v2147, %v2680
      %v2764 = vsel %vm449, %v2166, %v2682
      %v2765 = vsel %vm449, %v2185, %v2684
      %v2766 = vsel %vm449, %v2204, %v2686
      %vm2767 = vcmask 261120
      %v2768 = vsel %vm2767, %v2759, %v2704
      %v2769 = vsel %vm2767, %v2760, %v2706
      %v2770 = vsel %vm2767, %v2761, %v2708
      %v2771 = vsel %vm2767, %v2762, %v2710
      %v2772 = vsel %vm2767, %v2763, %v2712
      %v2773 = vsel %vm2767, %v2764, %v2714
      %v2774 = vsel %vm2767, %v2765, %v2716
      %v2775 = vsel %vm2767, %v2766, %v2718
      %vm2776 = vcmask 392192
      %v2777 = vsel %vm2776, %v2768, %v2736
      %v2778 = vsel %vm2776, %v2769, %v2738
      %v2779 = vsel %vm2776, %v2770, %v2740
      %v2780 = vsel %vm2776, %v2771, %v2742
      %v2781 = vsel %vm2776, %v2772, %v2744
      %v2782 = vsel %vm2776, %v2773, %v2746
      %v2783 = vsel %vm2776, %v2774, %v2748
      %v2784 = vsel %vm2776, %v2775, %v2750
      %v2785 = vpack.c.bf16 %v2778, %v2777
      %v2786 = vpack.c.bf16 %v2780, %v2779
      %v2787 = vpack.c.bf16 %v2782, %v2781
      %v2788 = vpack.c.bf16 %v2784, %v2783
      %v2789 = vld [vmem:[%s2] sm:$0xf]
      %v2790 = vld [vmem:[%s2 + $0x4] sm:$0xf]
      %v2791 = vld [vmem:[%s2 + $0x8] sm:$0xf]
      %v2792 = vld [vmem:[%s2 + $0xc] sm:$0xf]
      %v2793 = vld [vmem:[%s2 + $0x10] sm:$0xf]
      %v2794 = vld [vmem:[%s2 + $0x14] sm:$0xf]
      %v2795 = vld [vmem:[%s2 + $0x18] sm:$0xf]
      %v2796 = vld [vmem:[%s2 + $0x1c] sm:$0xf]
      %v2797 = vld [vmem:[%s3] sm:$0x1]
      %v2799 = vperm.slane %v2797, 0
      %v2809 = vunpack.c.l.b16 %v2789
      %v2810 = vunpack.c.l.b16 %v2790
      %v2811 = vunpack.c.l.b16 %v2791
      %v2812 = vunpack.c.l.b16 %v2792
      %v2813 = vunpack.c.l.b16 %v2793
      %v2814 = vunpack.c.l.b16 %v2794
      %v2815 = vunpack.c.l.b16 %v2795
      %v2816 = vunpack.c.l.b16 %v2796
      %v2817 = vpack.c.b16 %v2810, %v2809
      %v2818 = vpack.c.b16 %v2812, %v2811
      %v2819 = vpack.c.b16 %v2814, %v2813
      %v2820 = vpack.c.b16 %v2816, %v2815
      %v2826 = vsel %vm278, %v2785, 0
      %v2829 = vsel %vm278, %v2786, 0
      %v2832 = vsel %vm278, %v2787, 0
      %v2835 = vsel %vm278, %v2788, 0
      %2837 = vmatpush.bf16.msra.mxu0 0
      %2838 = vmatpush.bf16.msra.mxu0 0
      %2839 = vmatpush.bf16.msra.mxu0 0
      %2840 = vmatpush.bf16.msra.mxu0 0
      %2841 = vmatpush.bf16.msra.mxu0 %v2820
      %2842 = vmatpush.bf16.msra.mxu0 %v2819
      %2843 = vmatpush.bf16.msra.mxu0 %v2818
      %2844 = vmatpush.bf16.msra.mxu0 %v2817
      %2845 = vmatmul.bf16.gmra.mxu0 %v2826
      %v2846 = vpop.f32.mrf.mxu0
      %v2847 = vadd.f32 %v2799, %v2846
      %v2848 = vpop.f32.mrf.mxu0
      %v2849 = vadd.f32 %v2799, %v2848
      %2850 = vmatmul.bf16.gmra.mxu0 %v2829
      %v2851 = vpop.f32.mrf.mxu0
      %v2852 = vadd.f32 %v2799, %v2851
      %v2853 = vpop.f32.mrf.mxu0
      %v2854 = vadd.f32 %v2799, %v2853
      %2855 = vmatmul.bf16.gmra.mxu0 %v2832
      %v2856 = vpop.f32.mrf.mxu0
      %v2857 = vadd.f32 %v2799, %v2856
      %v2858 = vpop.f32.mrf.mxu0
      %v2859 = vadd.f32 %v2799, %v2858
      %2860 = vmatmul.bf16.gmra.mxu0 %v2835
      %v2861 = vpop.f32.mrf.mxu0
      %v2862 = vadd.f32 %v2799, %v2861
      %v2863 = vpop.f32.mrf.mxu0
      %v2864 = vadd.f32 %v2799, %v2863
      %2865 = vdwg.mxu0
      %2866 = vst.msk [vmem:[%s199] sm:$0xff] %vm278, %v2847
      %2867 = vst.msk [vmem:[%s199 + $0x8] sm:$0xff] %vm278, %v2849
      %2868 = vst.msk [vmem:[%s199 + $0x10] sm:$0xff] %vm278, %v2852
      %2869 = vst.msk [vmem:[%s199 + $0x18] sm:$0xff] %vm278, %v2854
      %2870 = vst.msk [vmem:[%s199 + $0x20] sm:$0xff] %vm278, %v2857
      %2871 = vst.msk [vmem:[%s199 + $0x28] sm:$0xff] %vm278, %v2859
      %2872 = vst.msk [vmem:[%s199 + $0x30] sm:$0xff] %vm278, %v2862
      %2873 = vst.msk [vmem:[%s199 + $0x38] sm:$0xff] %vm278, %v2864
      %s2874 = smul.u32 8, %s15
      %p2875 = scmp.lt.s32.totalorder %s2874, 15
      %s2876 = scalar_select %p2875, %s2874, 15
      %s2877 = smul.addr %s2876, 8
      %s2878 = scalar_lea.vmem %s4, %s2877
      // Predicated region
      $region37: #{tpu_custom_call.1} parent=35 // pred_check
        %p2879 = pneg %p122
      $region38: #{tpu_custom_call.1} parent=35 // pred_check_branch
        %2881 = sbr.rel (%p2879) target = $region40
      $region39: #{tpu_custom_call.1} parent=35 // pred_region
        %s2882 = smul.u32 8, %s15
      $region40: #{tpu_custom_call.1} parent=35 // pred_fallthru
        _
    $region36: #{tpu_custom_call.1} parent=5 // pred_fallthru
      _
    %p2883 = scmp.le.s32.totalorder 2, %s10
    // Predicated region
    $region41: #{tpu_custom_call.1} parent=5 // pred_check
      %p2884 = pneg %p2883
    $region42: #{tpu_custom_call.1} parent=5 // pred_check_branch
      %2886 = sbr.rel (%p2884) target = $region44
    $region43: #{tpu_custom_call.1} parent=5 // pred_region
      %s2887 = ssub.s32 %s10, 2
      // Predicated region
      $region45: #{tpu_custom_call.1} parent=43 // pred_check
        %p2888 = pneg %p128
      $region46: #{tpu_custom_call.1} parent=43 // pred_check_branch
        %2890 = sbr.rel (%p2888) target = $region48
      $region47: #{tpu_custom_call.1} parent=43 // pred_region
        %s2891 = smul.u32 8, %s16
        %p2892 = scmp.lt.s32.totalorder %s2891, 15
        %s2893 = scalar_select %p2892, %s2891, 15
        %s2894 = smul.addr %s2893, 8
        %s2895 = scalar_lea.vmem %s4, %s2894
      $region48: #{tpu_custom_call.1} parent=43 // pred_fallthru
        _
    $region44: #{tpu_custom_call.1} parent=5 // pred_fallthru
      _
  $region6: #{tpu_custom_call.1} parent=0 // loop_footer
    %s14 = sadd.s32 1, %s10
  $region7: #{tpu_custom_call.1} parent=0 // loop_footer_branch
    %9 = sbr.rel target = $region3
  $region8: #{tpu_custom_call.1} parent=0 // loop_exit
    _

</llo_original>
